<compile_context>
chip_gen: v5e
topology: v5e:2x2
jax: 0.10.0
libtpu: 0.0.40
codegen_flags: <defaults>
</compile_context>

<pallas_src>
import functools

import jax
import jax.numpy as jnp
from jax import lax
from jax.experimental import pallas as pl
from jax.experimental.pallas import tpu as pltpu

LN_EPS = 1e-5          # nn.LayerNorm(eps=1e-05)
NEG_SLOPE = 0.2        # GATConv LeakyReLU negative_slope (PyG default)
MASK_NEG = -1e30       # additive value for non-edges after masking


def _head_groups(num_heads, head_dim):
    """Group heads so each group's output slab is (ideally) 128 lanes wide."""
    hpg = max(1, 128 // head_dim) if head_dim < 128 else 1
    hpg = min(hpg, num_heads)
    groups, h = [], 0
    while h < num_heads:
        g = min(hpg, num_heads - h)
        groups.append((h, g))
        h += g
    return groups


def _pick_row_tile(n, max_tile):
    """Largest pow2 tile <= max_tile dividing n, preferring >=2 grid steps."""
    for t in (1024, 512, 256, 128):
        if t <= max_tile and n % t == 0 and n // t >= 2:
            return t
    for t in (1024, 512, 256, 128):
        if t <= max_tile and n % t == 0:
            return t
    return n


# ----------------------------------------------------------------------------
# Kernel 1: fused (optional LayerNorm) + GAT input projection (bf16 MXU).
#   xp        = ln(x) @ W          [tile, H*C]  (stored bf16)
#   alpha_src = xp @ Asel_src      [tile, H]    (f32)
#   alpha_dst = xp @ Asel_dst      [tile, H]    (f32)
# Asel_* are block-diagonal [H*C, H] selectors built host-side from PyG's
# att_src / att_dst vectors.
# ----------------------------------------------------------------------------
def gat_project_kernel(x_ref, gamma_ref, beta_ref, w_ref,
                       asel_src_ref, asel_dst_ref,
                       xp_ref, asrc_ref, adst_ref, *, apply_ln):
    if apply_ln:
        x = x_ref[...].astype(jnp.float32)
        mu = jnp.mean(x, axis=-1, keepdims=True)
        xc = x - mu
        var = jnp.mean(xc * xc, axis=-1, keepdims=True)
        x = xc * lax.rsqrt(var + LN_EPS)
        x = x * gamma_ref[...] + beta_ref[...]
        xb = x.astype(jnp.bfloat16)
    else:
        xb = x_ref[...].astype(jnp.bfloat16)
    # dropout(p=0.2) on node features is identity in inference mode.
    xp = jnp.dot(xb, w_ref[...], preferred_element_type=jnp.float32)
    xp_ref[...] = xp.astype(jnp.bfloat16)
    xpb = xp.astype(jnp.bfloat16)
    asrc_ref[...] = jnp.dot(xpb, asel_src_ref[...],
                            preferred_element_type=jnp.float32)
    adst_ref[...] = jnp.dot(xpb, asel_dst_ref[...],
                            preferred_element_type=jnp.float32)


# ----------------------------------------------------------------------------
# Kernel 2: per-head masked attention + aggregation for one tile of targets.
#   s[i, j] = LeakyReLU(alpha_dst[i,h] + alpha_src[j,h]), masked by int8 adj
#   out_h   = (exp(s - max) @ xp_h) * 1/sum_j exp(...)     (deferred division)
#   o[:, group] = concat(pair of heads) + bias [+ ELU]     (128-lane stores)
# ----------------------------------------------------------------------------
def gat_attend_kernel(adst_ref, asrc_t_ref, xp_ref, adj_ref, bias_ref, o_ref,
                      *, num_heads, head_dim, apply_elu):
    adst = adst_ref[...]                        # [T, H]  f32 (this target tile)
    asrc_t = asrc_t_ref[...]                    # [H, N]  f32 (all source nodes)
    adj = adj_ref[...].astype(jnp.float32)      # [T, N]  0/1 from int8
    bias = bias_ref[...]                        # [1, HC] f32

    for h0, gsz in _head_groups(num_heads, head_dim):
        col0 = h0 * head_dim
        gw = gsz * head_dim
        xp_grp = xp_ref[:, col0:col0 + gw]      # [N, gw] bf16, lane-aligned
        parts = []
        for hh in range(gsz):
            h = h0 + hh
            s = adst[:, h:h + 1] + asrc_t[h:h + 1, :]            # [T, N]
            s = jnp.maximum(s, NEG_SLOPE * s)                    # LeakyReLU(0.2)
            s = jnp.where(adj > 0.0, s, MASK_NEG)
            s = s - jnp.max(s, axis=-1, keepdims=True)
            e = jnp.exp(s)
            denom = jnp.sum(e, axis=-1, keepdims=True)           # [T, 1]
            # attention dropout (p=0.2) is identity in inference mode.
            agg = jnp.dot(e.astype(jnp.bfloat16),
                          xp_grp[:, hh * head_dim:(hh + 1) * head_dim],
                          preferred_element_type=jnp.float32)    # [T, D]
            parts.append(agg * pl.reciprocal(denom, approx=True))
        out = parts[0] if gsz == 1 else jnp.concatenate(parts, axis=-1)
        out = out + bias[:, col0:col0 + gw]
        if apply_elu:                                            # ELU(alpha=1)
            out = jnp.where(out > 0.0, out,
                            jnp.exp(jnp.minimum(out, 0.0)) - 1.0)
        o_ref[:, col0:col0 + gw] = out.astype(o_ref.dtype)


# ----------------------------------------------------------------------------
# pallas_call wrappers
# ----------------------------------------------------------------------------
def gat_project(x, gamma, beta, w, asel_src, asel_dst, *, apply_ln, row_tile):
    N, F_in = x.shape
    HC = w.shape[1]
    H = asel_src.shape[1]
    kern = functools.partial(gat_project_kernel, apply_ln=apply_ln)
    return pl.pallas_call(
        kern,
        out_shape=(jax.ShapeDtypeStruct((N, HC), jnp.bfloat16),   # xp (bf16)
                   jax.ShapeDtypeStruct((N, H), jnp.float32),     # alpha_src
                   jax.ShapeDtypeStruct((N, H), jnp.float32)),    # alpha_dst
        grid=(N // row_tile,),
        in_specs=[
            pl.BlockSpec((row_tile, F_in), lambda i: (i, 0)),     # x row tile
            pl.BlockSpec((1, F_in), lambda i: (0, 0)),            # ln gamma
            pl.BlockSpec((1, F_in), lambda i: (0, 0)),            # ln beta
            pl.BlockSpec((F_in, HC), lambda i: (0, 0)),           # W (bf16)
            pl.BlockSpec((HC, H), lambda i: (0, 0)),              # att_src sel
            pl.BlockSpec((HC, H), lambda i: (0, 0)),              # att_dst sel
        ],
        out_specs=(pl.BlockSpec((row_tile, HC), lambda i: (i, 0)),
                   pl.BlockSpec((row_tile, H), lambda i: (i, 0)),
                   pl.BlockSpec((row_tile, H), lambda i: (i, 0))),
        compiler_params=pltpu.CompilerParams(
            dimension_semantics=("parallel",)),
    )(x, gamma, beta, w, asel_src, asel_dst)


def gat_attend(adst, asrc_t, xp, adj_i8, bias, *, num_heads, head_dim,
               apply_elu, row_tile, out_dtype):
    N, HC = xp.shape
    kern = functools.partial(gat_attend_kernel, num_heads=num_heads,
                             head_dim=head_dim, apply_elu=apply_elu)
    return pl.pallas_call(
        kern,
        out_shape=jax.ShapeDtypeStruct((N, HC), out_dtype),
        grid=(N // row_tile,),
        in_specs=[
            pl.BlockSpec((row_tile, num_heads), lambda i: (i, 0)),  # alpha_dst tile
            pl.BlockSpec((num_heads, N), lambda i: (0, 0)),         # alpha_src (all)
            pl.BlockSpec((N, HC), lambda i: (0, 0)),                # xp bf16 (all)
            pl.BlockSpec((row_tile, N), lambda i: (i, 0)),          # int8 adjacency
            pl.BlockSpec((1, HC), lambda i: (0, 0)),                # bias
        ],
        out_specs=pl.BlockSpec((row_tile, HC), lambda i: (i, 0)),
        compiler_params=pltpu.CompilerParams(
            dimension_semantics=("parallel",)),
    )(adst, asrc_t, xp, adj_i8, bias)


def align_head_forward(x, adj_i8, params, *, attend_tile=128):
    """AlignHead.forward(): LN -> GATConv(E->64,h=8) -> ELU -> GATConv(512->E,h=1)."""
    N, _ = x.shape
    H1, C1 = params["att_src1"].shape
    H2, C2 = params["att_src2"].shape

    # Pad the node dimension so arbitrary entity counts are handled (padded
    # rows have no edges -> masked out as sources; padded targets sliced off).
    n_pad = pl.cdiv(N, 128) * 128
    if n_pad != N:
        x = jnp.pad(x, ((0, n_pad - N), (0, 0)))
        adj_i8 = jnp.pad(adj_i8, ((0, n_pad - N), (0, n_pad - N)))

    proj_tile = _pick_row_tile(n_pad, 1024)       # project: big memory-bound tiles
    att_tile = _pick_row_tile(n_pad, attend_tile)  # attend: [tile, N] mask rows

    bf16 = jnp.bfloat16
    w1 = params["w1"].astype(bf16)
    w2 = params["w2"].astype(bf16)
    s_src1 = params["asel_src1"].astype(bf16)
    s_dst1 = params["asel_dst1"].astype(bf16)
    s_src2 = params["asel_src2"].astype(bf16)
    s_dst2 = params["asel_dst2"].astype(bf16)

    # --- layer 1: LayerNorm + GATConv(E -> C1, heads=H1, concat=True) + ELU ---
    xp1, asrc1, adst1 = gat_project(
        x, params["ln_gamma"], params["ln_beta"], w1, s_src1, s_dst1,
        apply_ln=True, row_tile=proj_tile)
    h1 = gat_attend(adst1, asrc1.T, xp1, adj_i8, params["b1"],
                    num_heads=H1, head_dim=C1, apply_elu=True,
                    row_tile=att_tile, out_dtype=bf16)

    # dropout(p=0.2) between layers is identity in inference mode.

    # --- layer 2: GATConv(H1*C1 -> C2, heads=1, concat=False) ---
    f2 = H1 * C1
    ones = jnp.ones((1, f2), jnp.float32)      # dummies (LN skipped in layer 2)
    zeros = jnp.zeros((1, f2), jnp.float32)
    xp2, asrc2, adst2 = gat_project(
        h1, ones, zeros, w2, s_src2, s_dst2,
        apply_ln=False, row_tile=proj_tile)
    h2 = gat_attend(adst2, asrc2.T, xp2, adj_i8, params["b2"],
                    num_heads=H2, head_dim=C2, apply_elu=False,
                    row_tile=att_tile, out_dtype=jnp.float32)
    return h2[:N]


def build_att_selector(att):
    """[H, C] per-head attention vector -> block-diagonal [H*C, H] selector."""
    H, C = att.shape
    eye = jnp.eye(H, dtype=jnp.float32)
    return (att[:, :, None] * eye[:, None, :]).reshape(H * C, H)


# ----------------------------------------------------------------------------
# Pure-JAX f32 reference (same dense-adjacency math) for a correctness check
# ----------------------------------------------------------------------------
def reference_forward(x, adj_mask, params):
    HI = jax.lax.Precision.HIGHEST
    gamma = params["ln_gamma"][0]
    beta = params["ln_beta"][0]
    mu = jnp.mean(x, axis=-1, keepdims=True)
    var = jnp.mean((x - mu) ** 2, axis=-1, keepdims=True)
    xn = (x - mu) / jnp.sqrt(var + LN_EPS) * gamma + beta

    def gat(xin, w, att_src, att_dst, bias, concat):
        heads, cdim = att_src.shape
        n = xin.shape[0]
        xp = jnp.dot(xin, w, precision=HI)
        xph = xp.reshape(n, heads, cdim)
        a_s = jnp.einsum("nhc,hc->nh", xph, att_src, precision=HI)
        a_d = jnp.einsum("nhc,hc->nh", xph, att_dst, precision=HI)
        s = a_d.T[:, :, None] + a_s.T[:, None, :]            # [H, N, N]
        s = jnp.where(s > 0, s, NEG_SLOPE * s)
        s = s + adj_mask[None]
        attn = jax.nn.softmax(s, axis=-1)
        out = jnp.einsum("hij,jhc->ihc", attn, xph, precision=HI)
        out = out.reshape(n, heads * cdim) if concat else out.mean(axis=1)
        return out + bias

    h1 = gat(xn, params["w1"], params["att_src1"], params["att_dst1"],
             params["b1"][0], concat=True)
    h1 = jnp.where(h1 > 0, h1, jnp.exp(jnp.minimum(h1, 0.0)) - 1.0)   # ELU
    h2 = gat(h1, params["w2"], params["att_src2"], params["att_dst2"],
             params["b2"][0], concat=False)
    return h2


# ----------------------------------------------------------------------------
# Deterministic inputs and test
# ----------------------------------------------------------------------------
if __name__ == "__main__":
    # Small shapes consistent with the module structure:
    #   N entities, ent_hidden_size E, conv1: 8 heads x 64, conv2: 1 head -> E.
    N, E = 256, 128
    H1, C1 = 8, 64
    C2 = E
    NUM_EDGES = 2048

    key = jax.random.PRNGKey(0)
    ks = jax.random.split(key, 12)
    rnd = lambda k, s, sc=0.1: (sc * jax.random.normal(k, s)).astype(jnp.float32)

    params = {
        "ln_gamma": jnp.ones((1, E), jnp.float32),
        "ln_beta": jnp.zeros((1, E), jnp.float32),
        "w1": rnd(ks[0], (E, H1 * C1)),          # conv1 lin.weight^T
        "att_src1": rnd(ks[1], (H1, C1)),
        "att_dst1": rnd(ks[2], (H1, C1)),
        "b1": rnd(ks[3], (1, H1 * C1)),
        "w2": rnd(ks[4], (H1 * C1, C2)),         # conv2 lin.weight^T
        "att_src2": rnd(ks[5], (1, C2)),
        "att_dst2": rnd(ks[6], (1, C2)),
        "b2": rnd(ks[7], (1, C2)),
    }
    params["asel_src1"] = build_att_selector(params["att_src1"])
    params["asel_dst1"] = build_att_selector(params["att_dst1"])
    params["asel_src2"] = build_att_selector(params["att_src2"])
    params["asel_dst2"] = build_att_selector(params["att_dst2"])

    # TODO(synk): the real module loads ent_embeddings.ckpt / train2id.txt from
    # disk; both are synthesized deterministically in-script instead.
    x = rnd(ks[8], (N, E), 1.0)
    src = jax.random.randint(ks[9], (NUM_EDGES,), 0, N)
    dst = jax.random.randint(ks[10], (NUM_EDGES,), 0, N)

    # Dense int8 adjacency (one-time plain-JAX scatter): row i = target node,
    # col j = source node; self-loops added (GATConv add_self_loops=True).
    # TODO(synk): duplicate edges collapse here; PyG's edge softmax would count
    # them multiple times if train2id.txt contained duplicates.
    adj = jnp.zeros((N, N), jnp.float32).at[dst, src].set(1.0)
    adj = adj.at[jnp.arange(N), jnp.arange(N)].set(1.0)
    adj_i8 = (adj > 0).astype(jnp.int8)
    adj_mask = jnp.where(adj > 0, 0.0, MASK_NEG).astype(jnp.float32)

    y = align_head_forward(x, adj_i8, params)
    y = jax.block_until_ready(y)

    y_ref = reference_forward(x, adj_mask, params)
    assert y.shape == (N, E), y.shape
    max_err = float(jnp.max(jnp.abs(y - y_ref)))
    mean_err = float(jnp.mean(jnp.abs(y - y_ref)))
    # bf16 MXU operands (per perf review) + approx reciprocal => tolerance is
    # relaxed relative to the pure-f32 reference.
    assert jnp.allclose(y, y_ref, rtol=5e-2, atol=1e-1), (max_err, mean_err)

    print("KERNEL_OK")
</pallas_src>

<mosaic_0001>
module attributes {stable_mosaic.version = 11 : i64} {
  func.func @gat_project_kernel(%arg0: i32, %arg1: memref<128x128xf32, #tpu.memory_space<vmem>>, %arg2: memref<1x128xf32, #tpu.memory_space<vmem>>, %arg3: memref<1x128xf32, #tpu.memory_space<vmem>>, %arg4: memref<128x512xbf16, #tpu.memory_space<vmem>>, %arg5: memref<512x8xbf16, #tpu.memory_space<vmem>>, %arg6: memref<512x8xbf16, #tpu.memory_space<vmem>>, %arg7: memref<128x512xbf16, #tpu.memory_space<vmem>>, %arg8: memref<128x8xf32, #tpu.memory_space<vmem>>, %arg9: memref<128x8xf32, #tpu.memory_space<vmem>>) attributes {dimension_semantics = [#tpu.dimension_semantics<parallel>], iteration_bounds = array<i64: 2>, scalar_prefetch = 0 : i64, scratch_operands = 0 : i64, tpu.core_type = #tpu.core_type<tc>, window_params = [{transform_indices = @transform_0, window_bounds = array<i64: 128, 128>}, {pipeline_mode = #tpu.pipeline_mode<synchronous>, transform_indices = @transform_1, window_bounds = array<i64: 1, 128>}, {pipeline_mode = #tpu.pipeline_mode<synchronous>, transform_indices = @transform_2, window_bounds = array<i64: 1, 128>}, {pipeline_mode = #tpu.pipeline_mode<synchronous>, transform_indices = @transform_3, window_bounds = array<i64: 128, 512>}, {pipeline_mode = #tpu.pipeline_mode<synchronous>, transform_indices = @transform_4, window_bounds = array<i64: 512, 8>}, {pipeline_mode = #tpu.pipeline_mode<synchronous>, transform_indices = @transform_5, window_bounds = array<i64: 512, 8>}, {transform_indices = @transform_6, window_bounds = array<i64: 128, 512>}, {transform_indices = @transform_7, window_bounds = array<i64: 128, 8>}, {transform_indices = @transform_8, window_bounds = array<i64: 128, 8>}]} {
    %c0 = arith.constant 0 : index
    %c0_0 = arith.constant 0 : index
    %0 = vector.load %arg1[%c0, %c0_0] : memref<128x128xf32, #tpu.memory_space<vmem>>, vector<128x128xf32>
    %cst = arith.constant dense<0.000000e+00> : vector<128xf32>
    %1 = vector.multi_reduction <add>, %0, %cst [1] : vector<128x128xf32> to vector<128xf32>
    %2 = vector.shape_cast %1 : vector<128xf32> to vector<128x1xf32>
    %cst_1 = arith.constant 1.280000e+02 : f32
    %3 = vector.broadcast %cst_1 : f32 to vector<128x1xf32>
    %4 = arith.divf %2, %3 : vector<128x1xf32>
    %5 = vector.broadcast %4 : vector<128x1xf32> to vector<128x128xf32>
    %6 = arith.subf %0, %5 : vector<128x128xf32>
    %7 = arith.mulf %6, %6 : vector<128x128xf32>
    %cst_2 = arith.constant dense<0.000000e+00> : vector<128xf32>
    %8 = vector.multi_reduction <add>, %7, %cst_2 [1] : vector<128x128xf32> to vector<128xf32>
    %9 = vector.shape_cast %8 : vector<128xf32> to vector<128x1xf32>
    %cst_3 = arith.constant 1.280000e+02 : f32
    %10 = vector.broadcast %cst_3 : f32 to vector<128x1xf32>
    %11 = arith.divf %9, %10 : vector<128x1xf32>
    %cst_4 = arith.constant 9.99999974E-6 : f32
    %12 = vector.broadcast %cst_4 : f32 to vector<128x1xf32>
    %13 = arith.addf %11, %12 : vector<128x1xf32>
    %14 = math.rsqrt %13 : vector<128x1xf32>
    %15 = vector.broadcast %14 : vector<128x1xf32> to vector<128x128xf32>
    %16 = arith.mulf %6, %15 : vector<128x128xf32>
    %c0_5 = arith.constant 0 : index
    %c0_6 = arith.constant 0 : index
    %17 = vector.load %arg2[%c0_5, %c0_6] : memref<1x128xf32, #tpu.memory_space<vmem>>, vector<1x128xf32>
    %18 = vector.broadcast %17 : vector<1x128xf32> to vector<128x128xf32>
    %19 = arith.mulf %16, %18 : vector<128x128xf32>
    %c0_7 = arith.constant 0 : index
    %c0_8 = arith.constant 0 : index
    %20 = vector.load %arg3[%c0_7, %c0_8] : memref<1x128xf32, #tpu.memory_space<vmem>>, vector<1x128xf32>
    %21 = vector.broadcast %20 : vector<1x128xf32> to vector<128x128xf32>
    %22 = arith.addf %19, %21 : vector<128x128xf32>
    %23 = arith.truncf %22 : vector<128x128xf32> to vector<128x128xbf16>
    %c0_9 = arith.constant 0 : index
    %c0_10 = arith.constant 0 : index
    %24 = vector.load %arg4[%c0_9, %c0_10] : memref<128x512xbf16, #tpu.memory_space<vmem>>, vector<128x512xbf16>
    %cst_11 = arith.constant dense<0.000000e+00> : vector<128x512xf32>
    %25 = tpu.matmul %23, %24, %cst_11 {dimension_numbers = #tpu.dot_dimension_numbers<[1], [0], [0], [1], [0, 0, 1, 1], [], []>} : vector<128x128xbf16>, vector<128x512xbf16>, vector<128x512xf32> -> vector<128x512xf32>
    %26 = arith.truncf %25 : vector<128x512xf32> to vector<128x512xbf16>
    %c0_12 = arith.constant 0 : index
    %c0_13 = arith.constant 0 : index
    %27 = vector.load %arg7[%c0_12, %c0_13] : memref<128x512xbf16, #tpu.memory_space<vmem>>, vector<128x512xbf16>
    tpu.vector_store %arg7[%c0_12, %c0_13], %26 {strides = array<i32>} : memref<128x512xbf16, #tpu.memory_space<vmem>>, vector<128x512xbf16>,
    %28 = arith.truncf %25 : vector<128x512xf32> to vector<128x512xbf16>
    %c0_14 = arith.constant 0 : index
    %c0_15 = arith.constant 0 : index
    %29 = vector.load %arg5[%c0_14, %c0_15] : memref<512x8xbf16, #tpu.memory_space<vmem>>, vector<512x8xbf16>
    %cst_16 = arith.constant dense<0.000000e+00> : vector<128x8xf32>
    %30 = tpu.matmul %28, %29, %cst_16 {dimension_numbers = #tpu.dot_dimension_numbers<[1], [0], [0], [1], [0, 0, 1, 1], [], []>} : vector<128x512xbf16>, vector<512x8xbf16>, vector<128x8xf32> -> vector<128x8xf32>
    %c0_17 = arith.constant 0 : index
    %c0_18 = arith.constant 0 : index
    %31 = vector.load %arg8[%c0_17, %c0_18] : memref<128x8xf32, #tpu.memory_space<vmem>>, vector<128x8xf32>
    tpu.vector_store %arg8[%c0_17, %c0_18], %30 {strides = array<i32>} : memref<128x8xf32, #tpu.memory_space<vmem>>, vector<128x8xf32>,
    %c0_19 = arith.constant 0 : index
    %c0_20 = arith.constant 0 : index
    %32 = vector.load %arg6[%c0_19, %c0_20] : memref<512x8xbf16, #tpu.memory_space<vmem>>, vector<512x8xbf16>
    %cst_21 = arith.constant dense<0.000000e+00> : vector<128x8xf32>
    %33 = tpu.matmul %28, %32, %cst_21 {dimension_numbers = #tpu.dot_dimension_numbers<[1], [0], [0], [1], [0, 0, 1, 1], [], []>} : vector<128x512xbf16>, vector<512x8xbf16>, vector<128x8xf32> -> vector<128x8xf32>
    %c0_22 = arith.constant 0 : index
    %c0_23 = arith.constant 0 : index
    %34 = vector.load %arg9[%c0_22, %c0_23] : memref<128x8xf32, #tpu.memory_space<vmem>>, vector<128x8xf32>
    tpu.vector_store %arg9[%c0_22, %c0_23], %33 {strides = array<i32>} : memref<128x8xf32, #tpu.memory_space<vmem>>, vector<128x8xf32>,
    return
  }
  func.func @transform_0(%arg0: i32) -> (i32, i32) {
    %c0_i32 = arith.constant 0 : i32
    %c0_i32_0 = arith.constant 0 : i32
    return %arg0, %c0_i32 : i32, i32
  }
  func.func @transform_1(%arg0: i32) -> (i32, i32) {
    %c0_i32 = arith.constant 0 : i32
    %c0_i32_0 = arith.constant 0 : i32
    %c0_i32_1 = arith.constant 0 : i32
    return %c0_i32, %c0_i32_0 : i32, i32
  }
  func.func @transform_2(%arg0: i32) -> (i32, i32) {
    %c0_i32 = arith.constant 0 : i32
    %c0_i32_0 = arith.constant 0 : i32
    %c0_i32_1 = arith.constant 0 : i32
    return %c0_i32, %c0_i32_0 : i32, i32
  }
  func.func @transform_3(%arg0: i32) -> (i32, i32) {
    %c0_i32 = arith.constant 0 : i32
    %c0_i32_0 = arith.constant 0 : i32
    %c0_i32_1 = arith.constant 0 : i32
    return %c0_i32, %c0_i32_0 : i32, i32
  }
  func.func @transform_4(%arg0: i32) -> (i32, i32) {
    %c0_i32 = arith.constant 0 : i32
    %c0_i32_0 = arith.constant 0 : i32
    %c0_i32_1 = arith.constant 0 : i32
    return %c0_i32, %c0_i32_0 : i32, i32
  }
  func.func @transform_5(%arg0: i32) -> (i32, i32) {
    %c0_i32 = arith.constant 0 : i32
    %c0_i32_0 = arith.constant 0 : i32
    %c0_i32_1 = arith.constant 0 : i32
    return %c0_i32, %c0_i32_0 : i32, i32
  }
  func.func @transform_6(%arg0: i32) -> (i32, i32) {
    %c0_i32 = arith.constant 0 : i32
    %c0_i32_0 = arith.constant 0 : i32
    return %arg0, %c0_i32 : i32, i32
  }
  func.func @transform_7(%arg0: i32) -> (i32, i32) {
    %c0_i32 = arith.constant 0 : i32
    %c0_i32_0 = arith.constant 0 : i32
    return %arg0, %c0_i32 : i32, i32
  }
  func.func @transform_8(%arg0: i32) -> (i32, i32) {
    %c0_i32 = arith.constant 0 : i32
    %c0_i32_0 = arith.constant 0 : i32
    return %arg0, %c0_i32 : i32, i32
  }
}

</mosaic_0001>

<llo_original>
// kernel: tpu_custom_call.1
$region0: #{tpu_custom_call.1}
  #allocation0 [shape = 'u32[]', space=smem, size = 0x4, offset = 0x4, fixed_abs, tag = 'smem constant byte address 0x4 - core index']
  #allocation1 [shape = 'u32[72,128]{1,0:T(1,128)}', space=vmem, size = 0x9000, scoped, tag = 'internal scratch']
  %s0 = inlined_call_operand.vmem [shape: f32[256,128], index: 0, kind: input, shape index: {}]
  %s1 = inlined_call_operand.vmem [shape: f32[1,128], index: 1, kind: input, shape index: {}]
  %s2 = inlined_call_operand.vmem [shape: f32[1,128], index: 2, kind: input, shape index: {}]
  %s3 = inlined_call_operand.vmem [shape: bf16[128,512], index: 3, kind: input, shape index: {}]
  %s4 = inlined_call_operand.vmem [shape: bf16[512,8], index: 4, kind: input, shape index: {}]
  %s5 = inlined_call_operand.vmem [shape: bf16[512,8], index: 5, kind: input, shape index: {}]
  %s6 = inlined_call_operand.hbm [shape: bf16[256,512], index: 6, kind: output, shape index: {0}]
  %s7 = inlined_call_operand.vmem [shape: f32[256,8], index: 7, kind: output, shape index: {1}]
  %s8 = inlined_call_operand.vmem [shape: f32[256,8], index: 8, kind: output, shape index: {2}]
  %9 = xla_tuple %s6, %s7, %s8
  %s10 = sld [smem:[#allocation0]]
  $region73: #{tpu_custom_call.1} parent=0
    _
  %s12 = ssub.s32 1, %s10
  %s13 = scalar_select 0, %s12, %s10
  $region1: #{tpu_custom_call.1} parent=0
    #allocation2 [shape = 'u8[262144]{0}', space=vmem, size = 0x40000, scoped, tag = 'output window, operand 0']
    #allocation3 [shape = 's32[2]{0}', space=sflag, size = 0x8, scoped, tag = 'scoped memory for tpu_custom_call.1']
    %14 = vsyncpa [#allocation3], 0
    %s15 = scalar_lea.sflag [#allocation3], 1
    %16 = vsyncpa %s15, 0
    loop: start=0, step=1, limit=4
    $region2: #{tpu_custom_call.1} parent=1 // loop_pre_header
      _
    $region3: #{tpu_custom_call.1} parent=1 // loop_header
      %s18 = sphi 0, %s22
      %p19 = scmp.ge.s32.totalorder %s18, 4
      %s28 = sphi 0, %s30
      %s31 = sphi 0, %s28
      %s32 = sphi 0, %s31
      %s48 = sphi 0, %s32
      %s52 = sphi 0, %s52
      %s54 = sphi 0, %s52
      %s55 = sphi 0, %s54
      %s69 = sphi 0, %s55
      %s73 = sphi 0, %s73
      %s75 = sphi 0, %s73
      %s76 = sphi 0, %s75
      %s90 = sphi 0, %s76
      %s94 = sphi 0, %s94
      %s96 = sphi 0, %s94
      %s97 = sphi 0, %s96
      %s111 = sphi 0, %s97
      %s115 = sphi 0, %s115
      %s117 = sphi 0, %s115
      %s118 = sphi 0, %s117
      %s132 = sphi 0, %s118
      %s136 = sphi 0, %s136
      %s138 = sphi 0, %s136
      %s139 = sphi 0, %s138
      %s153 = sphi 0, %s139
      %s159 = sphi 0, %s161
      %s162 = sphi 0, %s159
      %s163 = sphi 0, %s162
      %s179 = sphi 0, %s163
      %s185 = sphi 0, %s187
      %s188 = sphi 0, %s185
      %s189 = sphi 0, %s188
      %s205 = sphi 0, %s189
      %s211 = sphi 0, %s213
      %s214 = sphi 0, %s211
      %s215 = sphi 0, %s214
      %s231 = sphi 0, %s215
    $region4: #{tpu_custom_call.1} parent=1 // loop_header_branch
      %21 = sbr.rel (%p19) target = $region8
    $region5: #{tpu_custom_call.1} parent=1 // loop_body
      %s23 = ssub.s32 %s18, 1
      %s24 = ssub.s32 %s18, 2
      %s25 = sadd.s32 %s18, 1
      %s26 = ssub.s32 %s18, %s25
      %p27 = scmp.eq.s32.totalorder %s26, 0
      %s29 = sadd.s32 %s28, 1
      %s30 = scalar_select %p27, %s28, %s29
      %p33 = pneg %p27
      %p34 = scmp.eq.s32.totalorder %s18, 1
      %p35 = por %p33, %p34
      %p36 = scmp.ne.s32.totalorder %s28, %s31
      %p37 = scmp.eq.s32.totalorder %s18, 0
      %p38 = por %p36, %p37
      %p39 = scmp.ne.s32.totalorder %s28, %s31
      %p40 = scmp.eq.s32.totalorder %s23, 1
      %p41 = por %p39, %p40
      %p42 = scmp.ne.s32.totalorder %s31, %s32
      %p43 = scmp.eq.s32.totalorder %s23, 0
      %p44 = por %p42, %p43
      %p45 = scmp.ne.s32.totalorder %s31, %s32
      %p46 = scmp.eq.s32.totalorder %s24, 1
      %p47 = por %p45, %p46
      %p49 = scmp.ne.s32.totalorder %s32, %s48
      %p50 = scmp.eq.s32.totalorder %s24, 0
      %p51 = por %p49, %p50
      %s53 = sadd.s32 %s52, 1
      %p56 = scmp.eq.s32.totalorder %s18, 1
      %p57 = scmp.ne.s32.totalorder %s52, %s54
      %p58 = scmp.eq.s32.totalorder %s18, 0
      %p59 = por %p57, %p58
      %p60 = scmp.ne.s32.totalorder %s52, %s54
      %p61 = scmp.eq.s32.totalorder %s23, 1
      %p62 = por %p60, %p61
      %p63 = scmp.ne.s32.totalorder %s54, %s55
      %p64 = scmp.eq.s32.totalorder %s23, 0
      %p65 = por %p63, %p64
      %p66 = scmp.ne.s32.totalorder %s54, %s55
      %p67 = scmp.eq.s32.totalorder %s24, 1
      %p68 = por %p66, %p67
      %p70 = scmp.ne.s32.totalorder %s55, %s69
      %p71 = scmp.eq.s32.totalorder %s24, 0
      %p72 = por %p70, %p71
      %s74 = sadd.s32 %s73, 1
      %p77 = scmp.eq.s32.totalorder %s18, 1
      %p78 = scmp.ne.s32.totalorder %s73, %s75
      %p79 = scmp.eq.s32.totalorder %s18, 0
      %p80 = por %p78, %p79
      %p81 = scmp.ne.s32.totalorder %s73, %s75
      %p82 = scmp.eq.s32.totalorder %s23, 1
      %p83 = por %p81, %p82
      %p84 = scmp.ne.s32.totalorder %s75, %s76
      %p85 = scmp.eq.s32.totalorder %s23, 0
      %p86 = por %p84, %p85
      %p87 = scmp.ne.s32.totalorder %s75, %s76
      %p88 = scmp.eq.s32.totalorder %s24, 1
      %p89 = por %p87, %p88
      %p91 = scmp.ne.s32.totalorder %s76, %s90
      %p92 = scmp.eq.s32.totalorder %s24, 0
      %p93 = por %p91, %p92
      %s95 = sadd.s32 %s94, 1
      %p98 = scmp.eq.s32.totalorder %s18, 1
      %p99 = scmp.ne.s32.totalorder %s94, %s96
      %p100 = scmp.eq.s32.totalorder %s18, 0
      %p101 = por %p99, %p100
      %p102 = scmp.ne.s32.totalorder %s94, %s96
      %p103 = scmp.eq.s32.totalorder %s23, 1
      %p104 = por %p102, %p103
      %p105 = scmp.ne.s32.totalorder %s96, %s97
      %p106 = scmp.eq.s32.totalorder %s23, 0
      %p107 = por %p105, %p106
      %p108 = scmp.ne.s32.totalorder %s96, %s97
      %p109 = scmp.eq.s32.totalorder %s24, 1
      %p110 = por %p108, %p109
      %p112 = scmp.ne.s32.totalorder %s97, %s111
      %p113 = scmp.eq.s32.totalorder %s24, 0
      %p114 = por %p112, %p113
      %s116 = sadd.s32 %s115, 1
      %p119 = scmp.eq.s32.totalorder %s18, 1
      %p120 = scmp.ne.s32.totalorder %s115, %s117
      %p121 = scmp.eq.s32.totalorder %s18, 0
      %p122 = por %p120, %p121
      %p123 = scmp.ne.s32.totalorder %s115, %s117
      %p124 = scmp.eq.s32.totalorder %s23, 1
      %p125 = por %p123, %p124
      %p126 = scmp.ne.s32.totalorder %s117, %s118
      %p127 = scmp.eq.s32.totalorder %s23, 0
      %p128 = por %p126, %p127
      %p129 = scmp.ne.s32.totalorder %s117, %s118
      %p130 = scmp.eq.s32.totalorder %s24, 1
      %p131 = por %p129, %p130
      %p133 = scmp.ne.s32.totalorder %s118, %s132
      %p134 = scmp.eq.s32.totalorder %s24, 0
      %p135 = por %p133, %p134
      %s137 = sadd.s32 %s136, 1
      %p140 = scmp.eq.s32.totalorder %s18, 1
      %p141 = scmp.ne.s32.totalorder %s136, %s138
      %p142 = scmp.eq.s32.totalorder %s18, 0
      %p143 = por %p141, %p142
      %p144 = scmp.ne.s32.totalorder %s136, %s138
      %p145 = scmp.eq.s32.totalorder %s23, 1
      %p146 = por %p144, %p145
      %p147 = scmp.ne.s32.totalorder %s138, %s139
      %p148 = scmp.eq.s32.totalorder %s23, 0
      %p149 = por %p147, %p148
      %p150 = scmp.ne.s32.totalorder %s138, %s139
      %p151 = scmp.eq.s32.totalorder %s24, 1
      %p152 = por %p150, %p151
      %p154 = scmp.ne.s32.totalorder %s139, %s153
      %p155 = scmp.eq.s32.totalorder %s24, 0
      %p156 = por %p154, %p155
      %s157 = ssub.s32 %s18, %s25
      %p158 = scmp.eq.s32.totalorder %s157, 0
      %s160 = sadd.s32 %s159, 1
      %s161 = scalar_select %p158, %s159, %s160
      %p164 = pneg %p158
      %p165 = scmp.eq.s32.totalorder %s18, 1
      %p166 = por %p164, %p165
      %p167 = scmp.ne.s32.totalorder %s159, %s162
      %p168 = scmp.eq.s32.totalorder %s18, 0
      %p169 = por %p167, %p168
      %p170 = scmp.ne.s32.totalorder %s159, %s162
      %p171 = scmp.eq.s32.totalorder %s23, 1
      %p172 = por %p170, %p171
      %p173 = scmp.ne.s32.totalorder %s162, %s163
      %p174 = scmp.eq.s32.totalorder %s23, 0
      %p175 = por %p173, %p174
      %p176 = scmp.ne.s32.totalorder %s162, %s163
      %p177 = scmp.eq.s32.totalorder %s24, 1
      %p178 = por %p176, %p177
      %p180 = scmp.ne.s32.totalorder %s163, %s179
      %p181 = scmp.eq.s32.totalorder %s24, 0
      %p182 = por %p180, %p181
      %s183 = ssub.s32 %s18, %s25
      %p184 = scmp.eq.s32.totalorder %s183, 0
      %s186 = sadd.s32 %s185, 1
      %s187 = scalar_select %p184, %s185, %s186
      %p190 = pneg %p184
      %p191 = scmp.eq.s32.totalorder %s18, 1
      %p192 = por %p190, %p191
      %p193 = scmp.ne.s32.totalorder %s185, %s188
      %p194 = scmp.eq.s32.totalorder %s18, 0
      %p195 = por %p193, %p194
      %p196 = scmp.ne.s32.totalorder %s185, %s188
      %p197 = scmp.eq.s32.totalorder %s23, 1
      %p198 = por %p196, %p197
      %p199 = scmp.ne.s32.totalorder %s188, %s189
      %p200 = scmp.eq.s32.totalorder %s23, 0
      %p201 = por %p199, %p200
      %p202 = scmp.ne.s32.totalorder %s188, %s189
      %p203 = scmp.eq.s32.totalorder %s24, 1
      %p204 = por %p202, %p203
      %p206 = scmp.ne.s32.totalorder %s189, %s205
      %p207 = scmp.eq.s32.totalorder %s24, 0
      %p208 = por %p206, %p207
      %s209 = ssub.s32 %s18, %s25
      %p210 = scmp.eq.s32.totalorder %s209, 0
      %s212 = sadd.s32 %s211, 1
      %s213 = scalar_select %p210, %s211, %s212
      %p216 = pneg %p210
      %p217 = scmp.eq.s32.totalorder %s18, 1
      %p218 = por %p216, %p217
      %p219 = scmp.ne.s32.totalorder %s211, %s214
      %p220 = scmp.eq.s32.totalorder %s18, 0
      %p221 = por %p219, %p220
      %p222 = scmp.ne.s32.totalorder %s211, %s214
      %p223 = scmp.eq.s32.totalorder %s23, 1
      %p224 = por %p222, %p223
      %p225 = scmp.ne.s32.totalorder %s214, %s215
      %p226 = scmp.eq.s32.totalorder %s23, 0
      %p227 = por %p225, %p226
      %p228 = scmp.ne.s32.totalorder %s214, %s215
      %p229 = scmp.eq.s32.totalorder %s24, 1
      %p230 = por %p228, %p229
      %p232 = scmp.ne.s32.totalorder %s215, %s231
      %p233 = scmp.eq.s32.totalorder %s24, 0
      %p234 = por %p232, %p233
      %p235 = scmp.le.s32.totalorder 1, %s18
      %p236 = scmp.lt.s32.totalorder %s18, 3
      %p237 = pnand %p235, %p236
      %p238 = pneg %p237
      // Predicated region
      $region9: #{tpu_custom_call.1} parent=5 // pred_check
        _
      $region10: #{tpu_custom_call.1} parent=5 // pred_check_branch
        %240 = sbr.rel (%p237) target = $region12
      $region11: #{tpu_custom_call.1} parent=5 // pred_region
        %s241 = ssub.s32 %s18, 1
        // Predicated region
        $region13: #{tpu_custom_call.1} parent=11 // pred_check
          %p242 = pneg %p65
        $region14: #{tpu_custom_call.1} parent=11 // pred_check_branch
          %244 = sbr.rel (%p242) target = $region16
        $region15: #{tpu_custom_call.1} parent=11 // pred_region
          _
        $region16: #{tpu_custom_call.1} parent=11 // pred_fallthru
          _
        // Predicated region
        $region17: #{tpu_custom_call.1} parent=11 // pred_check
          %p245 = pneg %p86
        $region18: #{tpu_custom_call.1} parent=11 // pred_check_branch
          %247 = sbr.rel (%p245) target = $region20
        $region19: #{tpu_custom_call.1} parent=11 // pred_region
          _
        $region20: #{tpu_custom_call.1} parent=11 // pred_fallthru
          _
        // Predicated region
        $region21: #{tpu_custom_call.1} parent=11 // pred_check
          %p248 = pneg %p107
        $region22: #{tpu_custom_call.1} parent=11 // pred_check_branch
          %250 = sbr.rel (%p248) target = $region24
        $region23: #{tpu_custom_call.1} parent=11 // pred_region
          _
        $region24: #{tpu_custom_call.1} parent=11 // pred_fallthru
          _
        // Predicated region
        $region25: #{tpu_custom_call.1} parent=11 // pred_check
          %p251 = pneg %p128
        $region26: #{tpu_custom_call.1} parent=11 // pred_check_branch
          %253 = sbr.rel (%p251) target = $region28
        $region27: #{tpu_custom_call.1} parent=11 // pred_region
          _
        $region28: #{tpu_custom_call.1} parent=11 // pred_fallthru
          _
        // Predicated region
        $region29: #{tpu_custom_call.1} parent=11 // pred_check
          %p254 = pneg %p149
        $region30: #{tpu_custom_call.1} parent=11 // pred_check_branch
          %256 = sbr.rel (%p254) target = $region32
        $region31: #{tpu_custom_call.1} parent=11 // pred_region
          _
        $region32: #{tpu_custom_call.1} parent=11 // pred_fallthru
          _
      $region12: #{tpu_custom_call.1} parent=5 // pred_fallthru
        _
      %p257 = scmp.lt.s32.totalorder %s18, 2
      // Predicated region
      $region33: #{tpu_custom_call.1} parent=5 // pred_check
        %p258 = pneg %p257
      $region34: #{tpu_custom_call.1} parent=5 // pred_check_branch
        %260 = sbr.rel (%p258) target = $region36
      $region35: #{tpu_custom_call.1} parent=5 // pred_region
        // Predicated region
        $region37: #{tpu_custom_call.1} parent=35 // pred_check
          %p261 = pneg %p38
        $region38: #{tpu_custom_call.1} parent=35 // pred_check_branch
          %263 = sbr.rel (%p261) target = $region40
        $region39: #{tpu_custom_call.1} parent=35 // pred_region
          %s264 = smul.u32 16, %s18
          %p265 = scmp.lt.s32.totalorder %s264, 31
          %s266 = scalar_select %p265, %s264, 31
          %s267 = smul.addr %s266, 8
          %s268 = scalar_lea.vmem %s0, %s267
          %s269 = smul.u32 16, %s18
        $region40: #{tpu_custom_call.1} parent=35 // pred_fallthru
          _
      $region36: #{tpu_custom_call.1} parent=5 // pred_fallthru
        _
      %p270 = scmp.le.s32.totalorder 1, %s18
      %p271 = scmp.lt.s32.totalorder %s18, 3
      %p272 = pnand %p270, %p271
      %p273 = pneg %p272
      // Predicated region
      $region41: #{tpu_custom_call.1} parent=5 // pred_check
        _
      $region42: #{tpu_custom_call.1} parent=5 // pred_check_branch
        %275 = sbr.rel (%p272) target = $region44
      $region43: #{tpu_custom_call.1} parent=5 // pred_region
        %s276 = ssub.s32 %s18, 1
        %s277 = smul.u32 16, %s23
        %p278 = scmp.lt.s32.totalorder %s277, 31
        %s279 = scalar_select %p278, %s277, 31
        %s280 = smul.addr %s279, 8
        %s281 = scalar_lea.vmem %s0, %s280
        %p282 = pneg %p44
        %p283 = pneg %p41
        %p284 = pneg %p65
        %p285 = pneg %p62
        %p286 = pneg %p86
        %p287 = pneg %p83
        %p288 = pneg %p107
        %p289 = pneg %p104
        %p290 = pneg %p128
        %p291 = pneg %p125
        %p292 = pneg %p149
        %p293 = pneg %p146
        %p294 = pneg %p175
        %p295 = pneg %p172
        %s296 = sand.u32 %s162, 1
        %s297 = scalar_lea.sflag [#allocation3], %s296
        %s298 = sand.u32 %s162, 1
        %s299 = smul.addr %s298, 256
        %s300 = scalar_lea.vmem [#allocation2], %s299
        %p301 = pneg %p201
        %p302 = pneg %p198
        %s303 = smul.u32 16, %s23
        %p304 = scmp.lt.s32.totalorder %s303, 31
        %s305 = scalar_select %p304, %s303, 31
        %s306 = smul.addr %s305, 8
        %s307 = scalar_lea.vmem %s7, %s306
        %p308 = pneg %p227
        %p309 = pneg %p224
        %s310 = smul.u32 16, %s23
        %p311 = scmp.lt.s32.totalorder %s310, 31
        %s312 = scalar_select %p311, %s310, 31
        %s313 = smul.addr %s312, 8
        %s314 = scalar_lea.vmem %s8, %s313
        %s315 = smul.u32 16, %s23
        %p316 = scmp.lt.s32.totalorder %s315, 31
        %s317 = scalar_select %p316, %s315, 31
        %s318 = smul.addr %s317, 8
        %s319 = scalar_lea.vmem %s0, %s318
        %s320 = smul.u32 16, %s23
        %s321 = smul.u32 16, %s23
        %s322 = smul.u32 16, %s23
        %p323 = scmp.lt.s32.totalorder %s322, 31
        %s324 = scalar_select %p323, %s322, 31
        %s325 = smul.addr %s324, 8
        %s326 = scalar_lea.vmem %s7, %s325
        %s327 = smul.u32 16, %s23
        %s328 = smul.u32 16, %s23
        %p329 = scmp.lt.s32.totalorder %s328, 31
        %s330 = scalar_select %p329, %s328, 31
        %s331 = smul.addr %s330, 8
        %s332 = scalar_lea.vmem %s8, %s331
        %s333 = smul.u32 16, %s23
        %v334 = vld [vmem:[%s319] sm:$0xff]
        %v335 = vld [vmem:[%s319 + $0x8] sm:$0xff]
        %v336 = vld [vmem:[%s319 + $0x10] sm:$0xff]
        %v337 = vld [vmem:[%s319 + $0x18] sm:$0xff]
        %v338 = vld [vmem:[%s319 + $0x20] sm:$0xff]
        %v339 = vld [vmem:[%s319 + $0x28] sm:$0xff]
        %v340 = vld [vmem:[%s319 + $0x30] sm:$0xff]
        %v341 = vld [vmem:[%s319 + $0x38] sm:$0xff]
        %v342 = vld [vmem:[%s319 + $0x40] sm:$0xff]
        %v343 = vld [vmem:[%s319 + $0x48] sm:$0xff]
        %v344 = vld [vmem:[%s319 + $0x50] sm:$0xff]
        %v345 = vld [vmem:[%s319 + $0x58] sm:$0xff]
        %v346 = vld [vmem:[%s319 + $0x60] sm:$0xff]
        %v347 = vld [vmem:[%s319 + $0x68] sm:$0xff]
        %v348 = vld [vmem:[%s319 + $0x70] sm:$0xff]
        %v349 = vld [vmem:[%s319 + $0x78] sm:$0xff]
        %350 = vadd.xlane.f32.xlu0 %v334
        %v351 = vpop.xlane.xlu0 %350
        %352 = vadd.xlane.f32.xlu0 %v335
        %v353 = vpop.xlane.xlu0 %352
        %354 = vadd.xlane.f32.xlu0 %v336
        %v355 = vpop.xlane.xlu0 %354
        %356 = vadd.xlane.f32.xlu0 %v337
        %v357 = vpop.xlane.xlu0 %356
        %358 = vadd.xlane.f32.xlu0 %v338
        %v359 = vpop.xlane.xlu0 %358
        %360 = vadd.xlane.f32.xlu0 %v339
        %v361 = vpop.xlane.xlu0 %360
        %362 = vadd.xlane.f32.xlu0 %v340
        %v363 = vpop.xlane.xlu0 %362
        %364 = vadd.xlane.f32.xlu0 %v341
        %v365 = vpop.xlane.xlu0 %364
        %366 = vadd.xlane.f32.xlu0 %v342
        %v367 = vpop.xlane.xlu0 %366
        %368 = vadd.xlane.f32.xlu0 %v343
        %v369 = vpop.xlane.xlu0 %368
        %370 = vadd.xlane.f32.xlu0 %v344
        %v371 = vpop.xlane.xlu0 %370
        %372 = vadd.xlane.f32.xlu0 %v345
        %v373 = vpop.xlane.xlu0 %372
        %374 = vadd.xlane.f32.xlu0 %v346
        %v375 = vpop.xlane.xlu0 %374
        %376 = vadd.xlane.f32.xlu0 %v347
        %v377 = vpop.xlane.xlu0 %376
        %378 = vadd.xlane.f32.xlu0 %v348
        %v379 = vpop.xlane.xlu0 %378
        %380 = vadd.xlane.f32.xlu0 %v349
        %v381 = vpop.xlane.xlu0 %380
        %v382 = vrcp.pop 128.0
        %v383 = vmul.f32 128.0, %v382
        %v384 = vsub.f32 1.0, %v383
        %v385 = vmul.f32 %v382, %v384
        %v386 = vadd.f32 %v382, %v385
        %vm387 = vweird.f32 %v382
        %v388 = vsel %vm387, %v382, %v386
        %v389 = vmul.f32 %v351, %v388
        %v390 = vmul.f32 %v353, %v388
        %v391 = vmul.f32 %v355, %v388
        %v392 = vmul.f32 %v357, %v388
        %v393 = vmul.f32 %v359, %v388
        %v394 = vmul.f32 %v361, %v388
        %v395 = vmul.f32 %v363, %v388
        %v396 = vmul.f32 %v365, %v388
        %v397 = vmul.f32 %v367, %v388
        %v398 = vmul.f32 %v369, %v388
        %v399 = vmul.f32 %v371, %v388
        %v400 = vmul.f32 %v373, %v388
        %v401 = vmul.f32 %v375, %v388
        %v402 = vmul.f32 %v377, %v388
        %v403 = vmul.f32 %v379, %v388
        %v404 = vmul.f32 %v381, %v388
        %v405 = vsub.f32 %v334, %v389
        %v406 = vsub.f32 %v335, %v390
        %v407 = vsub.f32 %v336, %v391
        %v408 = vsub.f32 %v337, %v392
        %v409 = vsub.f32 %v338, %v393
        %v410 = vsub.f32 %v339, %v394
        %v411 = vsub.f32 %v340, %v395
        %v412 = vsub.f32 %v341, %v396
        %v413 = vsub.f32 %v342, %v397
        %v414 = vsub.f32 %v343, %v398
        %v415 = vsub.f32 %v344, %v399
        %v416 = vsub.f32 %v345, %v400
        %v417 = vsub.f32 %v346, %v401
        %v418 = vsub.f32 %v347, %v402
        %v419 = vsub.f32 %v348, %v403
        %v420 = vsub.f32 %v349, %v404
        %v421 = vmul.f32 %v405, %v405
        %v422 = vmul.f32 %v406, %v406
        %v423 = vmul.f32 %v407, %v407
        %v424 = vmul.f32 %v408, %v408
        %v425 = vmul.f32 %v409, %v409
        %v426 = vmul.f32 %v410, %v410
        %v427 = vmul.f32 %v411, %v411
        %v428 = vmul.f32 %v412, %v412
        %v429 = vmul.f32 %v413, %v413
        %v430 = vmul.f32 %v414, %v414
        %v431 = vmul.f32 %v415, %v415
        %v432 = vmul.f32 %v416, %v416
        %v433 = vmul.f32 %v417, %v417
        %v434 = vmul.f32 %v418, %v418
        %v435 = vmul.f32 %v419, %v419
        %v436 = vmul.f32 %v420, %v420
        %437 = vadd.xlane.f32.xlu0 %v421
        %v438 = vpop.xlane.xlu0 %437
        %439 = vadd.xlane.f32.xlu0 %v422
        %v440 = vpop.xlane.xlu0 %439
        %441 = vadd.xlane.f32.xlu0 %v423
        %v442 = vpop.xlane.xlu0 %441
        %443 = vadd.xlane.f32.xlu0 %v424
        %v444 = vpop.xlane.xlu0 %443
        %445 = vadd.xlane.f32.xlu0 %v425
        %v446 = vpop.xlane.xlu0 %445
        %447 = vadd.xlane.f32.xlu0 %v426
        %v448 = vpop.xlane.xlu0 %447
        %449 = vadd.xlane.f32.xlu0 %v427
        %v450 = vpop.xlane.xlu0 %449
        %451 = vadd.xlane.f32.xlu0 %v428
        %v452 = vpop.xlane.xlu0 %451
        %453 = vadd.xlane.f32.xlu0 %v429
        %v454 = vpop.xlane.xlu0 %453
        %455 = vadd.xlane.f32.xlu0 %v430
        %v456 = vpop.xlane.xlu0 %455
        %457 = vadd.xlane.f32.xlu0 %v431
        %v458 = vpop.xlane.xlu0 %457
        %459 = vadd.xlane.f32.xlu0 %v432
        %v460 = vpop.xlane.xlu0 %459
        %461 = vadd.xlane.f32.xlu0 %v433
        %v462 = vpop.xlane.xlu0 %461
        %463 = vadd.xlane.f32.xlu0 %v434
        %v464 = vpop.xlane.xlu0 %463
        %465 = vadd.xlane.f32.xlu0 %v435
        %v466 = vpop.xlane.xlu0 %465
        %467 = vadd.xlane.f32.xlu0 %v436
        %v468 = vpop.xlane.xlu0 %467
        %v469 = vmul.f32 %v438, %v388
        %v470 = vmul.f32 %v440, %v388
        %v471 = vmul.f32 %v442, %v388
        %v472 = vmul.f32 %v444, %v388
        %v473 = vmul.f32 %v446, %v388
        %v474 = vmul.f32 %v448, %v388
        %v475 = vmul.f32 %v450, %v388
        %v476 = vmul.f32 %v452, %v388
        %v477 = vmul.f32 %v454, %v388
        %v478 = vmul.f32 %v456, %v388
        %v479 = vmul.f32 %v458, %v388
        %v480 = vmul.f32 %v460, %v388
        %v481 = vmul.f32 %v462, %v388
        %v482 = vmul.f32 %v464, %v388
        %v483 = vmul.f32 %v466, %v388
        %v484 = vmul.f32 %v468, %v388
        %v485 = vadd.f32 %v469, 1e-05
        %v486 = vadd.f32 %v470, 1e-05
        %v487 = vadd.f32 %v471, 1e-05
        %v488 = vadd.f32 %v472, 1e-05
        %v489 = vadd.f32 %v473, 1e-05
        %v490 = vadd.f32 %v474, 1e-05
        %v491 = vadd.f32 %v475, 1e-05
        %v492 = vadd.f32 %v476, 1e-05
        %v493 = vadd.f32 %v477, 1e-05
        %v494 = vadd.f32 %v478, 1e-05
        %v495 = vadd.f32 %v479, 1e-05
        %v496 = vadd.f32 %v480, 1e-05
        %v497 = vadd.f32 %v481, 1e-05
        %v498 = vadd.f32 %v482, 1e-05
        %v499 = vadd.f32 %v483, 1e-05
        %v500 = vadd.f32 %v484, 1e-05
        %v501 = vrsqrt.pop %v485
        %v502 = vmul.f32 %v501, %v485
        %v503 = vmul.f32 %v502, %v501
        %v504 = vmul.f32 0.5, %v503
        %v505 = vsub.f32 1.5, %v504
        %v506 = vmul.f32 %v501, %v505
        %vm507 = vweird.f32 %v485
        %vm508 = vweird.f32 %v501
        %vm509 = vmor %vm507, %vm508
        %v510 = vsel %vm509, %v501, %v506
        %v511 = vrsqrt.pop %v486
        %v512 = vmul.f32 %v511, %v486
        %v513 = vmul.f32 %v512, %v511
        %v514 = vmul.f32 0.5, %v513
        %v515 = vsub.f32 1.5, %v514
        %v516 = vmul.f32 %v511, %v515
        %vm517 = vweird.f32 %v486
        %vm518 = vweird.f32 %v511
        %vm519 = vmor %vm517, %vm518
        %v520 = vsel %vm519, %v511, %v516
        %v521 = vrsqrt.pop %v487
        %v522 = vmul.f32 %v521, %v487
        %v523 = vmul.f32 %v522, %v521
        %v524 = vmul.f32 0.5, %v523
        %v525 = vsub.f32 1.5, %v524
        %v526 = vmul.f32 %v521, %v525
        %vm527 = vweird.f32 %v487
        %vm528 = vweird.f32 %v521
        %vm529 = vmor %vm527, %vm528
        %v530 = vsel %vm529, %v521, %v526
        %v531 = vrsqrt.pop %v488
        %v532 = vmul.f32 %v531, %v488
        %v533 = vmul.f32 %v532, %v531
        %v534 = vmul.f32 0.5, %v533
        %v535 = vsub.f32 1.5, %v534
        %v536 = vmul.f32 %v531, %v535
        %vm537 = vweird.f32 %v488
        %vm538 = vweird.f32 %v531
        %vm539 = vmor %vm537, %vm538
        %v540 = vsel %vm539, %v531, %v536
        %v541 = vrsqrt.pop %v489
        %v542 = vmul.f32 %v541, %v489
        %v543 = vmul.f32 %v542, %v541
        %v544 = vmul.f32 0.5, %v543
        %v545 = vsub.f32 1.5, %v544
        %v546 = vmul.f32 %v541, %v545
        %vm547 = vweird.f32 %v489
        %vm548 = vweird.f32 %v541
        %vm549 = vmor %vm547, %vm548
        %v550 = vsel %vm549, %v541, %v546
        %v551 = vrsqrt.pop %v490
        %v552 = vmul.f32 %v551, %v490
        %v553 = vmul.f32 %v552, %v551
        %v554 = vmul.f32 0.5, %v553
        %v555 = vsub.f32 1.5, %v554
        %v556 = vmul.f32 %v551, %v555
        %vm557 = vweird.f32 %v490
        %vm558 = vweird.f32 %v551
        %vm559 = vmor %vm557, %vm558
        %v560 = vsel %vm559, %v551, %v556
        %v561 = vrsqrt.pop %v491
        %v562 = vmul.f32 %v561, %v491
        %v563 = vmul.f32 %v562, %v561
        %v564 = vmul.f32 0.5, %v563
        %v565 = vsub.f32 1.5, %v564
        %v566 = vmul.f32 %v561, %v565
        %vm567 = vweird.f32 %v491
        %vm568 = vweird.f32 %v561
        %vm569 = vmor %vm567, %vm568
        %v570 = vsel %vm569, %v561, %v566
        %v571 = vrsqrt.pop %v492
        %v572 = vmul.f32 %v571, %v492
        %v573 = vmul.f32 %v572, %v571
        %v574 = vmul.f32 0.5, %v573
        %v575 = vsub.f32 1.5, %v574
        %v576 = vmul.f32 %v571, %v575
        %vm577 = vweird.f32 %v492
        %vm578 = vweird.f32 %v571
        %vm579 = vmor %vm577, %vm578
        %v580 = vsel %vm579, %v571, %v576
        %v581 = vrsqrt.pop %v493
        %v582 = vmul.f32 %v581, %v493
        %v583 = vmul.f32 %v582, %v581
        %v584 = vmul.f32 0.5, %v583
        %v585 = vsub.f32 1.5, %v584
        %v586 = vmul.f32 %v581, %v585
        %vm587 = vweird.f32 %v493
        %vm588 = vweird.f32 %v581
        %vm589 = vmor %vm587, %vm588
        %v590 = vsel %vm589, %v581, %v586
        %v591 = vrsqrt.pop %v494
        %v592 = vmul.f32 %v591, %v494
        %v593 = vmul.f32 %v592, %v591
        %v594 = vmul.f32 0.5, %v593
        %v595 = vsub.f32 1.5, %v594
        %v596 = vmul.f32 %v591, %v595
        %vm597 = vweird.f32 %v494
        %vm598 = vweird.f32 %v591
        %vm599 = vmor %vm597, %vm598
        %v600 = vsel %vm599, %v591, %v596
        %v601 = vrsqrt.pop %v495
        %v602 = vmul.f32 %v601, %v495
        %v603 = vmul.f32 %v602, %v601
        %v604 = vmul.f32 0.5, %v603
        %v605 = vsub.f32 1.5, %v604
        %v606 = vmul.f32 %v601, %v605
        %vm607 = vweird.f32 %v495
        %vm608 = vweird.f32 %v601
        %vm609 = vmor %vm607, %vm608
        %v610 = vsel %vm609, %v601, %v606
        %v611 = vrsqrt.pop %v496
        %v612 = vmul.f32 %v611, %v496
        %v613 = vmul.f32 %v612, %v611
        %v614 = vmul.f32 0.5, %v613
        %v615 = vsub.f32 1.5, %v614
        %v616 = vmul.f32 %v611, %v615
        %vm617 = vweird.f32 %v496
        %vm618 = vweird.f32 %v611
        %vm619 = vmor %vm617, %vm618
        %v620 = vsel %vm619, %v611, %v616
        %v621 = vrsqrt.pop %v497
        %v622 = vmul.f32 %v621, %v497
        %v623 = vmul.f32 %v622, %v621
        %v624 = vmul.f32 0.5, %v623
        %v625 = vsub.f32 1.5, %v624
        %v626 = vmul.f32 %v621, %v625
        %vm627 = vweird.f32 %v497
        %vm628 = vweird.f32 %v621
        %vm629 = vmor %vm627, %vm628
        %v630 = vsel %vm629, %v621, %v626
        %v631 = vrsqrt.pop %v498
        %v632 = vmul.f32 %v631, %v498
        %v633 = vmul.f32 %v632, %v631
        %v634 = vmul.f32 0.5, %v633
        %v635 = vsub.f32 1.5, %v634
        %v636 = vmul.f32 %v631, %v635
        %vm637 = vweird.f32 %v498
        %vm638 = vweird.f32 %v631
        %vm639 = vmor %vm637, %vm638
        %v640 = vsel %vm639, %v631, %v636
        %v641 = vrsqrt.pop %v499
        %v642 = vmul.f32 %v641, %v499
        %v643 = vmul.f32 %v642, %v641
        %v644 = vmul.f32 0.5, %v643
        %v645 = vsub.f32 1.5, %v644
        %v646 = vmul.f32 %v641, %v645
        %vm647 = vweird.f32 %v499
        %vm648 = vweird.f32 %v641
        %vm649 = vmor %vm647, %vm648
        %v650 = vsel %vm649, %v641, %v646
        %v651 = vrsqrt.pop %v500
        %v652 = vmul.f32 %v651, %v500
        %v653 = vmul.f32 %v652, %v651
        %v654 = vmul.f32 0.5, %v653
        %v655 = vsub.f32 1.5, %v654
        %v656 = vmul.f32 %v651, %v655
        %vm657 = vweird.f32 %v500
        %vm658 = vweird.f32 %v651
        %vm659 = vmor %vm657, %vm658
        %v660 = vsel %vm659, %v651, %v656
        %v661 = vmul.f32 %v405, %v510
        %v662 = vmul.f32 %v406, %v520
        %v663 = vmul.f32 %v407, %v530
        %v664 = vmul.f32 %v408, %v540
        %v665 = vmul.f32 %v409, %v550
        %v666 = vmul.f32 %v410, %v560
        %v667 = vmul.f32 %v411, %v570
        %v668 = vmul.f32 %v412, %v580
        %v669 = vmul.f32 %v413, %v590
        %v670 = vmul.f32 %v414, %v600
        %v671 = vmul.f32 %v415, %v610
        %v672 = vmul.f32 %v416, %v620
        %v673 = vmul.f32 %v417, %v630
        %v674 = vmul.f32 %v418, %v640
        %v675 = vmul.f32 %v419, %v650
        %v676 = vmul.f32 %v420, %v660
        %v677 = vld [vmem:[%s1] sm:$0x1]
        %v679 = vperm.slane %v677, 0
        %v681 = vmul.f32 %v661, %v679
        %v682 = vmul.f32 %v662, %v679
        %v683 = vmul.f32 %v663, %v679
        %v684 = vmul.f32 %v664, %v679
        %v685 = vmul.f32 %v665, %v679
        %v686 = vmul.f32 %v666, %v679
        %v687 = vmul.f32 %v667, %v679
        %v688 = vmul.f32 %v668, %v679
        %v689 = vmul.f32 %v669, %v679
        %v690 = vmul.f32 %v670, %v679
        %v691 = vmul.f32 %v671, %v679
        %v692 = vmul.f32 %v672, %v679
        %v693 = vmul.f32 %v673, %v679
        %v694 = vmul.f32 %v674, %v679
        %v695 = vmul.f32 %v675, %v679
        %v696 = vmul.f32 %v676, %v679
        %v697 = vld [vmem:[%s2] sm:$0x1]
        %v699 = vperm.slane %v697, 0
        %v701 = vadd.f32 %v681, %v699
        %v702 = vadd.f32 %v682, %v699
        %v703 = vadd.f32 %v683, %v699
        %v704 = vadd.f32 %v684, %v699
        %v705 = vadd.f32 %v685, %v699
        %v706 = vadd.f32 %v686, %v699
        %v707 = vadd.f32 %v687, %v699
        %v708 = vadd.f32 %v688, %v699
        %v709 = vadd.f32 %v689, %v699
        %v710 = vadd.f32 %v690, %v699
        %v711 = vadd.f32 %v691, %v699
        %v712 = vadd.f32 %v692, %v699
        %v713 = vadd.f32 %v693, %v699
        %v714 = vadd.f32 %v694, %v699
        %v715 = vadd.f32 %v695, %v699
        %v716 = vadd.f32 %v696, %v699
        %v717 = vpack.c.bf16 %v702, %v701
        %v718 = vpack.c.bf16 %v704, %v703
        %v719 = vpack.c.bf16 %v706, %v705
        %v720 = vpack.c.bf16 %v708, %v707
        %v721 = vpack.c.bf16 %v710, %v709
        %v722 = vpack.c.bf16 %v712, %v711
        %v723 = vpack.c.bf16 %v714, %v713
        %v724 = vpack.c.bf16 %v716, %v715
        %v725 = vld [vmem:[%s3] sm:$0xff]
        %v726 = vld [vmem:[%s3 + $0x8] sm:$0xff]
        %v727 = vld [vmem:[%s3 + $0x10] sm:$0xff]
        %v728 = vld [vmem:[%s3 + $0x18] sm:$0xff]
        %v729 = vld [vmem:[%s3 + $0x20] sm:$0xff]
        %v730 = vld [vmem:[%s3 + $0x28] sm:$0xff]
        %v731 = vld [vmem:[%s3 + $0x30] sm:$0xff]
        %v732 = vld [vmem:[%s3 + $0x38] sm:$0xff]
        %v733 = vld [vmem:[%s3 + $0x40] sm:$0xff]
        %v734 = vld [vmem:[%s3 + $0x48] sm:$0xff]
        %v735 = vld [vmem:[%s3 + $0x50] sm:$0xff]
        %v736 = vld [vmem:[%s3 + $0x58] sm:$0xff]
        %v737 = vld [vmem:[%s3 + $0x60] sm:$0xff]
        %v738 = vld [vmem:[%s3 + $0x68] sm:$0xff]
        %v739 = vld [vmem:[%s3 + $0x70] sm:$0xff]
        %v740 = vld [vmem:[%s3 + $0x78] sm:$0xff]
        %v741 = vld [vmem:[%s3 + $0x80] sm:$0xff]
        %v742 = vld [vmem:[%s3 + $0x88] sm:$0xff]
        %v743 = vld [vmem:[%s3 + $0x90] sm:$0xff]
        %v744 = vld [vmem:[%s3 + $0x98] sm:$0xff]
        %v745 = vld [vmem:[%s3 + $0xa0] sm:$0xff]
        %v746 = vld [vmem:[%s3 + $0xa8] sm:$0xff]
        %v747 = vld [vmem:[%s3 + $0xb0] sm:$0xff]
        %v748 = vld [vmem:[%s3 + $0xb8] sm:$0xff]
        %v749 = vld [vmem:[%s3 + $0xc0] sm:$0xff]
        %v750 = vld [vmem:[%s3 + $0xc8] sm:$0xff]
        %v751 = vld [vmem:[%s3 + $0xd0] sm:$0xff]
        %v752 = vld [vmem:[%s3 + $0xd8] sm:$0xff]
        %v753 = vld [vmem:[%s3 + $0xe0] sm:$0xff]
        %v754 = vld [vmem:[%s3 + $0xe8] sm:$0xff]
        %v755 = vld [vmem:[%s3 + $0xf0] sm:$0xff]
        %v756 = vld [vmem:[%s3 + $0xf8] sm:$0xff]
        %v789 = vunpack.c.l.b16 %v725
        %v790 = vunpack.c.h.b16 %v725
        %v791 = vunpack.c.l.b16 %v726
        %v792 = vunpack.c.h.b16 %v726
        %v793 = vunpack.c.l.b16 %v727
        %v794 = vunpack.c.h.b16 %v727
        %v795 = vunpack.c.l.b16 %v728
        %v796 = vunpack.c.h.b16 %v728
        %v797 = vunpack.c.l.b16 %v729
        %v798 = vunpack.c.h.b16 %v729
        %v799 = vunpack.c.l.b16 %v730
        %v800 = vunpack.c.h.b16 %v730
        %v801 = vunpack.c.l.b16 %v731
        %v802 = vunpack.c.h.b16 %v731
        %v803 = vunpack.c.l.b16 %v732
        %v804 = vunpack.c.h.b16 %v732
        %v805 = vunpack.c.l.b16 %v733
        %v806 = vunpack.c.h.b16 %v733
        %v807 = vunpack.c.l.b16 %v734
        %v808 = vunpack.c.h.b16 %v734
        %v809 = vunpack.c.l.b16 %v735
        %v810 = vunpack.c.h.b16 %v735
        %v811 = vunpack.c.l.b16 %v736
        %v812 = vunpack.c.h.b16 %v736
        %v813 = vunpack.c.l.b16 %v737
        %v814 = vunpack.c.h.b16 %v737
        %v815 = vunpack.c.l.b16 %v738
        %v816 = vunpack.c.h.b16 %v738
        %v817 = vunpack.c.l.b16 %v739
        %v818 = vunpack.c.h.b16 %v739
        %v819 = vunpack.c.l.b16 %v740
        %v820 = vunpack.c.h.b16 %v740
        %v821 = vunpack.c.l.b16 %v741
        %v822 = vunpack.c.h.b16 %v741
        %v823 = vunpack.c.l.b16 %v742
        %v824 = vunpack.c.h.b16 %v742
        %v825 = vunpack.c.l.b16 %v743
        %v826 = vunpack.c.h.b16 %v743
        %v827 = vunpack.c.l.b16 %v744
        %v828 = vunpack.c.h.b16 %v744
        %v829 = vunpack.c.l.b16 %v745
        %v830 = vunpack.c.h.b16 %v745
        %v831 = vunpack.c.l.b16 %v746
        %v832 = vunpack.c.h.b16 %v746
        %v833 = vunpack.c.l.b16 %v747
        %v834 = vunpack.c.h.b16 %v747
        %v835 = vunpack.c.l.b16 %v748
        %v836 = vunpack.c.h.b16 %v748
        %v837 = vunpack.c.l.b16 %v749
        %v838 = vunpack.c.h.b16 %v749
        %v839 = vunpack.c.l.b16 %v750
        %v840 = vunpack.c.h.b16 %v750
        %v841 = vunpack.c.l.b16 %v751
        %v842 = vunpack.c.h.b16 %v751
        %v843 = vunpack.c.l.b16 %v752
        %v844 = vunpack.c.h.b16 %v752
        %v845 = vunpack.c.l.b16 %v753
        %v846 = vunpack.c.h.b16 %v753
        %v847 = vunpack.c.l.b16 %v754
        %v848 = vunpack.c.h.b16 %v754
        %v849 = vunpack.c.l.b16 %v755
        %v850 = vunpack.c.h.b16 %v755
        %v851 = vunpack.c.l.b16 %v756
        %v852 = vunpack.c.h.b16 %v756
        %v853 = vpack.c.b16 %v793, %v789
        %v854 = vpack.c.b16 %v794, %v790
        %v855 = vpack.c.b16 %v795, %v791
        %v856 = vpack.c.b16 %v796, %v792
        %v857 = vpack.c.b16 %v801, %v797
        %v858 = vpack.c.b16 %v802, %v798
        %v859 = vpack.c.b16 %v803, %v799
        %v860 = vpack.c.b16 %v804, %v800
        %v861 = vpack.c.b16 %v809, %v805
        %v862 = vpack.c.b16 %v810, %v806
        %v863 = vpack.c.b16 %v811, %v807
        %v864 = vpack.c.b16 %v812, %v808
        %v865 = vpack.c.b16 %v817, %v813
        %v866 = vpack.c.b16 %v818, %v814
        %v867 = vpack.c.b16 %v819, %v815
        %v868 = vpack.c.b16 %v820, %v816
        %v869 = vpack.c.b16 %v825, %v821
        %v870 = vpack.c.b16 %v826, %v822
        %v871 = vpack.c.b16 %v827, %v823
        %v872 = vpack.c.b16 %v828, %v824
        %v873 = vpack.c.b16 %v833, %v829
        %v874 = vpack.c.b16 %v834, %v830
        %v875 = vpack.c.b16 %v835, %v831
        %v876 = vpack.c.b16 %v836, %v832
        %v877 = vpack.c.b16 %v841, %v837
        %v878 = vpack.c.b16 %v842, %v838
        %v879 = vpack.c.b16 %v843, %v839
        %v880 = vpack.c.b16 %v844, %v840
        %v881 = vpack.c.b16 %v849, %v845
        %v882 = vpack.c.b16 %v850, %v846
        %v883 = vpack.c.b16 %v851, %v847
        %v884 = vpack.c.b16 %v852, %v848
        %917 = vmatpush.bf16.msra.mxu0 %v881
        %918 = vmatpush.bf16.msra.mxu0 %v877
        %919 = vmatpush.bf16.msra.mxu0 %v873
        %920 = vmatpush.bf16.msra.mxu0 %v869
        %921 = vmatpush.bf16.msra.mxu0 %v865
        %922 = vmatpush.bf16.msra.mxu0 %v861
        %923 = vmatpush.bf16.msra.mxu0 %v857
        %924 = vmatpush.bf16.msra.mxu0 %v853
        %925 = vmatmul.bf16.gmra.mxu0 %v717
        %v926 = vpop.f32.mrf.mxu0
        %v927 = vadd.f32 0.0, %v926
        %v928 = vpop.f32.mrf.mxu0
        %v929 = vadd.f32 0.0, %v928
        %930 = vmatmul.bf16.gmra.mxu0 %v718
        %v931 = vpop.f32.mrf.mxu0
        %v932 = vadd.f32 0.0, %v931
        %v933 = vpop.f32.mrf.mxu0
        %v934 = vadd.f32 0.0, %v933
        %935 = vmatmul.bf16.gmra.mxu0 %v719
        %v936 = vpop.f32.mrf.mxu0
        %v937 = vadd.f32 0.0, %v936
        %v938 = vpop.f32.mrf.mxu0
        %v939 = vadd.f32 0.0, %v938
        %940 = vmatmul.bf16.gmra.mxu0 %v720
        %v941 = vpop.f32.mrf.mxu0
        %v942 = vadd.f32 0.0, %v941
        %v943 = vpop.f32.mrf.mxu0
        %v944 = vadd.f32 0.0, %v943
        %945 = vmatmul.bf16.gmra.mxu0 %v721
        %v946 = vpop.f32.mrf.mxu0
        %v947 = vadd.f32 0.0, %v946
        %v948 = vpop.f32.mrf.mxu0
        %v949 = vadd.f32 0.0, %v948
        %950 = vmatmul.bf16.gmra.mxu0 %v722
        %v951 = vpop.f32.mrf.mxu0
        %v952 = vadd.f32 0.0, %v951
        %v953 = vpop.f32.mrf.mxu0
        %v954 = vadd.f32 0.0, %v953
        %955 = vmatmul.bf16.gmra.mxu0 %v723
        %v956 = vpop.f32.mrf.mxu0
        %v957 = vadd.f32 0.0, %v956
        %v958 = vpop.f32.mrf.mxu0
        %v959 = vadd.f32 0.0, %v958
        %960 = vmatmul.bf16.gmra.mxu0 %v724
        %v961 = vpop.f32.mrf.mxu0
        %v962 = vadd.f32 0.0, %v961
        %v963 = vpop.f32.mrf.mxu0
        %v964 = vadd.f32 0.0, %v963
        %965 = vdwg.mxu0
        %966 = vmatpush.bf16.msra.mxu0 %v882
        %967 = vmatpush.bf16.msra.mxu0 %v878
        %968 = vmatpush.bf16.msra.mxu0 %v874
        %969 = vmatpush.bf16.msra.mxu0 %v870
        %970 = vmatpush.bf16.msra.mxu0 %v866
        %971 = vmatpush.bf16.msra.mxu0 %v862
        %972 = vmatpush.bf16.msra.mxu0 %v858
        %973 = vmatpush.bf16.msra.mxu0 %v854
        %974 = vmatmul.bf16.gmra.mxu0 %v717
        %v975 = vpop.f32.mrf.mxu0
        %v976 = vadd.f32 0.0, %v975
        %v977 = vpop.f32.mrf.mxu0
        %v978 = vadd.f32 0.0, %v977
        %979 = vmatmul.bf16.gmra.mxu0 %v718
        %v980 = vpop.f32.mrf.mxu0
        %v981 = vadd.f32 0.0, %v980
        %v982 = vpop.f32.mrf.mxu0
        %v983 = vadd.f32 0.0, %v982
        %984 = vmatmul.bf16.gmra.mxu0 %v719
        %v985 = vpop.f32.mrf.mxu0
        %v986 = vadd.f32 0.0, %v985
        %v987 = vpop.f32.mrf.mxu0
        %v988 = vadd.f32 0.0, %v987
        %989 = vmatmul.bf16.gmra.mxu0 %v720
        %v990 = vpop.f32.mrf.mxu0
        %v991 = vadd.f32 0.0, %v990
        %v992 = vpop.f32.mrf.mxu0
        %v993 = vadd.f32 0.0, %v992
        %994 = vmatmul.bf16.gmra.mxu0 %v721
        %v995 = vpop.f32.mrf.mxu0
        %v996 = vadd.f32 0.0, %v995
        %v997 = vpop.f32.mrf.mxu0
        %v998 = vadd.f32 0.0, %v997
        %999 = vmatmul.bf16.gmra.mxu0 %v722
        %v1000 = vpop.f32.mrf.mxu0
        %v1001 = vadd.f32 0.0, %v1000
        %v1002 = vpop.f32.mrf.mxu0
        %v1003 = vadd.f32 0.0, %v1002
        %1004 = vmatmul.bf16.gmra.mxu0 %v723
        %v1005 = vpop.f32.mrf.mxu0
        %v1006 = vadd.f32 0.0, %v1005
        %v1007 = vpop.f32.mrf.mxu0
        %v1008 = vadd.f32 0.0, %v1007
        %1009 = vmatmul.bf16.gmra.mxu0 %v724
        %v1010 = vpop.f32.mrf.mxu0
        %v1011 = vadd.f32 0.0, %v1010
        %v1012 = vpop.f32.mrf.mxu0
        %v1013 = vadd.f32 0.0, %v1012
        %1014 = vdwg.mxu0
        %1015 = vmatpush.bf16.msra.mxu0 %v883
        %1016 = vmatpush.bf16.msra.mxu0 %v879
        %1017 = vmatpush.bf16.msra.mxu0 %v875
        %1018 = vmatpush.bf16.msra.mxu0 %v871
        %1019 = vmatpush.bf16.msra.mxu0 %v867
        %1020 = vmatpush.bf16.msra.mxu0 %v863
        %1021 = vmatpush.bf16.msra.mxu0 %v859
        %1022 = vmatpush.bf16.msra.mxu0 %v855
        %1023 = vmatmul.bf16.gmra.mxu0 %v717
        %v1024 = vpop.f32.mrf.mxu0
        %v1025 = vadd.f32 0.0, %v1024
        %v1026 = vpop.f32.mrf.mxu0
        %v1027 = vadd.f32 0.0, %v1026
        %1028 = vmatmul.bf16.gmra.mxu0 %v718
        %v1029 = vpop.f32.mrf.mxu0
        %v1030 = vadd.f32 0.0, %v1029
        %v1031 = vpop.f32.mrf.mxu0
        %v1032 = vadd.f32 0.0, %v1031
        %1033 = vmatmul.bf16.gmra.mxu0 %v719
        %v1034 = vpop.f32.mrf.mxu0
        %v1035 = vadd.f32 0.0, %v1034
        %v1036 = vpop.f32.mrf.mxu0
        %v1037 = vadd.f32 0.0, %v1036
        %1038 = vmatmul.bf16.gmra.mxu0 %v720
        %v1039 = vpop.f32.mrf.mxu0
        %v1040 = vadd.f32 0.0, %v1039
        %v1041 = vpop.f32.mrf.mxu0
        %v1042 = vadd.f32 0.0, %v1041
        %1043 = vmatmul.bf16.gmra.mxu0 %v721
        %v1044 = vpop.f32.mrf.mxu0
        %v1045 = vadd.f32 0.0, %v1044
        %v1046 = vpop.f32.mrf.mxu0
        %v1047 = vadd.f32 0.0, %v1046
        %1048 = vmatmul.bf16.gmra.mxu0 %v722
        %v1049 = vpop.f32.mrf.mxu0
        %v1050 = vadd.f32 0.0, %v1049
        %v1051 = vpop.f32.mrf.mxu0
        %v1052 = vadd.f32 0.0, %v1051
        %1053 = vmatmul.bf16.gmra.mxu0 %v723
        %v1054 = vpop.f32.mrf.mxu0
        %v1055 = vadd.f32 0.0, %v1054
        %v1056 = vpop.f32.mrf.mxu0
        %v1057 = vadd.f32 0.0, %v1056
        %1058 = vmatmul.bf16.gmra.mxu0 %v724
        %v1059 = vpop.f32.mrf.mxu0
        %v1060 = vadd.f32 0.0, %v1059
        %v1061 = vpop.f32.mrf.mxu0
        %v1062 = vadd.f32 0.0, %v1061
        %1063 = vdwg.mxu0
        %1064 = vmatpush.bf16.msra.mxu0 %v884
        %1065 = vmatpush.bf16.msra.mxu0 %v880
        %1066 = vmatpush.bf16.msra.mxu0 %v876
        %1067 = vmatpush.bf16.msra.mxu0 %v872
        %1068 = vmatpush.bf16.msra.mxu0 %v868
        %1069 = vmatpush.bf16.msra.mxu0 %v864
        %1070 = vmatpush.bf16.msra.mxu0 %v860
        %1071 = vmatpush.bf16.msra.mxu0 %v856
        %1072 = vmatmul.bf16.gmra.mxu0 %v717
        %v1073 = vpop.f32.mrf.mxu0
        %v1074 = vadd.f32 0.0, %v1073
        %v1075 = vpop.f32.mrf.mxu0
        %v1076 = vadd.f32 0.0, %v1075
        %1077 = vmatmul.bf16.gmra.mxu0 %v718
        %v1078 = vpop.f32.mrf.mxu0
        %v1079 = vadd.f32 0.0, %v1078
        %v1080 = vpop.f32.mrf.mxu0
        %v1081 = vadd.f32 0.0, %v1080
        %1082 = vmatmul.bf16.gmra.mxu0 %v719
        %v1083 = vpop.f32.mrf.mxu0
        %v1084 = vadd.f32 0.0, %v1083
        %v1085 = vpop.f32.mrf.mxu0
        %v1086 = vadd.f32 0.0, %v1085
        %1087 = vmatmul.bf16.gmra.mxu0 %v720
        %v1088 = vpop.f32.mrf.mxu0
        %v1089 = vadd.f32 0.0, %v1088
        %v1090 = vpop.f32.mrf.mxu0
        %v1091 = vadd.f32 0.0, %v1090
        %1092 = vmatmul.bf16.gmra.mxu0 %v721
        %v1093 = vpop.f32.mrf.mxu0
        %v1094 = vadd.f32 0.0, %v1093
        %v1095 = vpop.f32.mrf.mxu0
        %v1096 = vadd.f32 0.0, %v1095
        %1097 = vmatmul.bf16.gmra.mxu0 %v722
        %v1098 = vpop.f32.mrf.mxu0
        %v1099 = vadd.f32 0.0, %v1098
        %v1100 = vpop.f32.mrf.mxu0
        %v1101 = vadd.f32 0.0, %v1100
        %1102 = vmatmul.bf16.gmra.mxu0 %v723
        %v1103 = vpop.f32.mrf.mxu0
        %v1104 = vadd.f32 0.0, %v1103
        %v1105 = vpop.f32.mrf.mxu0
        %v1106 = vadd.f32 0.0, %v1105
        %1107 = vmatmul.bf16.gmra.mxu0 %v724
        %v1108 = vpop.f32.mrf.mxu0
        %v1109 = vadd.f32 0.0, %v1108
        %v1110 = vpop.f32.mrf.mxu0
        %v1111 = vadd.f32 0.0, %v1110
        %1112 = vdwg.mxu0
        %v1113 = vpack.c.bf16 %v976, %v927
        %v1114 = vpack.c.bf16 %v1074, %v1025
        %v1115 = vpack.c.bf16 %v978, %v929
        %v1116 = vpack.c.bf16 %v1076, %v1027
        %v1117 = vpack.c.bf16 %v981, %v932
        %v1118 = vpack.c.bf16 %v1079, %v1030
        %v1119 = vpack.c.bf16 %v983, %v934
        %v1120 = vpack.c.bf16 %v1081, %v1032
        %v1121 = vpack.c.bf16 %v986, %v937
        %v1122 = vpack.c.bf16 %v1084, %v1035
        %v1123 = vpack.c.bf16 %v988, %v939
        %v1124 = vpack.c.bf16 %v1086, %v1037
        %v1125 = vpack.c.bf16 %v991, %v942
        %v1126 = vpack.c.bf16 %v1089, %v1040
        %v1127 = vpack.c.bf16 %v993, %v944
        %v1128 = vpack.c.bf16 %v1091, %v1042
        %v1129 = vpack.c.bf16 %v996, %v947
        %v1130 = vpack.c.bf16 %v1094, %v1045
        %v1131 = vpack.c.bf16 %v998, %v949
        %v1132 = vpack.c.bf16 %v1096, %v1047
        %v1133 = vpack.c.bf16 %v1001, %v952
        %v1134 = vpack.c.bf16 %v1099, %v1050
        %v1135 = vpack.c.bf16 %v1003, %v954
        %v1136 = vpack.c.bf16 %v1101, %v1052
        %v1137 = vpack.c.bf16 %v1006, %v957
        %v1138 = vpack.c.bf16 %v1104, %v1055
        %v1139 = vpack.c.bf16 %v1008, %v959
        %v1140 = vpack.c.bf16 %v1106, %v1057
        %v1141 = vpack.c.bf16 %v1011, %v962
        %v1142 = vpack.c.bf16 %v1109, %v1060
        %v1143 = vpack.c.bf16 %v1013, %v964
        %v1144 = vpack.c.bf16 %v1111, %v1062
        %1145 = vst [vmem:[%s300] sm:$0xff] %v1113
        %1146 = vst [vmem:[%s300 + $0x8] sm:$0xff] %v1114
        %1147 = vst [vmem:[%s300 + $0x10] sm:$0xff] %v1115
        %1148 = vst [vmem:[%s300 + $0x18] sm:$0xff] %v1116
        %1149 = vst [vmem:[%s300 + $0x20] sm:$0xff] %v1117
        %1150 = vst [vmem:[%s300 + $0x28] sm:$0xff] %v1118
        %1151 = vst [vmem:[%s300 + $0x30] sm:$0xff] %v1119
        %1152 = vst [vmem:[%s300 + $0x38] sm:$0xff] %v1120
        %1153 = vst [vmem:[%s300 + $0x40] sm:$0xff] %v1121
        %1154 = vst [vmem:[%s300 + $0x48] sm:$0xff] %v1122
        %1155 = vst [vmem:[%s300 + $0x50] sm:$0xff] %v1123
        %1156 = vst [vmem:[%s300 + $0x58] sm:$0xff] %v1124
        %1157 = vst [vmem:[%s300 + $0x60] sm:$0xff] %v1125
        %1158 = vst [vmem:[%s300 + $0x68] sm:$0xff] %v1126
        %1159 = vst [vmem:[%s300 + $0x70] sm:$0xff] %v1127
        %1160 = vst [vmem:[%s300 + $0x78] sm:$0xff] %v1128
        %1161 = vst [vmem:[%s300 + $0x80] sm:$0xff] %v1129
        %1162 = vst [vmem:[%s300 + $0x88] sm:$0xff] %v1130
        %1163 = vst [vmem:[%s300 + $0x90] sm:$0xff] %v1131
        %1164 = vst [vmem:[%s300 + $0x98] sm:$0xff] %v1132
        %1165 = vst [vmem:[%s300 + $0xa0] sm:$0xff] %v1133
        %1166 = vst [vmem:[%s300 + $0xa8] sm:$0xff] %v1134
        %1167 = vst [vmem:[%s300 + $0xb0] sm:$0xff] %v1135
        %1168 = vst [vmem:[%s300 + $0xb8] sm:$0xff] %v1136
        %1169 = vst [vmem:[%s300 + $0xc0] sm:$0xff] %v1137
        %1170 = vst [vmem:[%s300 + $0xc8] sm:$0xff] %v1138
        %1171 = vst [vmem:[%s300 + $0xd0] sm:$0xff] %v1139
        %1172 = vst [vmem:[%s300 + $0xd8] sm:$0xff] %v1140
        %1173 = vst [vmem:[%s300 + $0xe0] sm:$0xff] %v1141
        %1174 = vst [vmem:[%s300 + $0xe8] sm:$0xff] %v1142
        %1175 = vst [vmem:[%s300 + $0xf0] sm:$0xff] %v1143
        %1176 = vst [vmem:[%s300 + $0xf8] sm:$0xff] %v1144
        %v1177 = vld [vmem:[%s4] sm:$0xf]
        %v1178 = vld [vmem:[%s4 + $0x4] sm:$0xf]
        %v1179 = vld [vmem:[%s4 + $0x8] sm:$0xf]
        %v1180 = vld [vmem:[%s4 + $0xc] sm:$0xf]
        %v1181 = vld [vmem:[%s4 + $0x10] sm:$0xf]
        %v1182 = vld [vmem:[%s4 + $0x14] sm:$0xf]
        %v1183 = vld [vmem:[%s4 + $0x18] sm:$0xf]
        %v1184 = vld [vmem:[%s4 + $0x1c] sm:$0xf]
        %v1185 = vld [vmem:[%s4 + $0x20] sm:$0xf]
        %v1186 = vld [vmem:[%s4 + $0x24] sm:$0xf]
        %v1187 = vld [vmem:[%s4 + $0x28] sm:$0xf]
        %v1188 = vld [vmem:[%s4 + $0x2c] sm:$0xf]
        %v1189 = vld [vmem:[%s4 + $0x30] sm:$0xf]
        %v1190 = vld [vmem:[%s4 + $0x34] sm:$0xf]
        %v1191 = vld [vmem:[%s4 + $0x38] sm:$0xf]
        %v1192 = vld [vmem:[%s4 + $0x3c] sm:$0xf]
        %v1193 = vld [vmem:[%s4 + $0x40] sm:$0xf]
        %v1194 = vld [vmem:[%s4 + $0x44] sm:$0xf]
        %v1195 = vld [vmem:[%s4 + $0x48] sm:$0xf]
        %v1196 = vld [vmem:[%s4 + $0x4c] sm:$0xf]
        %v1197 = vld [vmem:[%s4 + $0x50] sm:$0xf]
        %v1198 = vld [vmem:[%s4 + $0x54] sm:$0xf]
        %v1199 = vld [vmem:[%s4 + $0x58] sm:$0xf]
        %v1200 = vld [vmem:[%s4 + $0x5c] sm:$0xf]
        %v1201 = vld [vmem:[%s4 + $0x60] sm:$0xf]
        %v1202 = vld [vmem:[%s4 + $0x64] sm:$0xf]
        %v1203 = vld [vmem:[%s4 + $0x68] sm:$0xf]
        %v1204 = vld [vmem:[%s4 + $0x6c] sm:$0xf]
        %v1205 = vld [vmem:[%s4 + $0x70] sm:$0xf]
        %v1206 = vld [vmem:[%s4 + $0x74] sm:$0xf]
        %v1207 = vld [vmem:[%s4 + $0x78] sm:$0xf]
        %v1208 = vld [vmem:[%s4 + $0x7c] sm:$0xf]
        %v1209 = vld [vmem:[%s4 + $0x80] sm:$0xf]
        %v1210 = vld [vmem:[%s4 + $0x84] sm:$0xf]
        %v1211 = vld [vmem:[%s4 + $0x88] sm:$0xf]
        %v1212 = vld [vmem:[%s4 + $0x8c] sm:$0xf]
        %v1213 = vld [vmem:[%s4 + $0x90] sm:$0xf]
        %v1214 = vld [vmem:[%s4 + $0x94] sm:$0xf]
        %v1215 = vld [vmem:[%s4 + $0x98] sm:$0xf]
        %v1216 = vld [vmem:[%s4 + $0x9c] sm:$0xf]
        %v1217 = vld [vmem:[%s4 + $0xa0] sm:$0xf]
        %v1218 = vld [vmem:[%s4 + $0xa4] sm:$0xf]
        %v1219 = vld [vmem:[%s4 + $0xa8] sm:$0xf]
        %v1220 = vld [vmem:[%s4 + $0xac] sm:$0xf]
        %v1221 = vld [vmem:[%s4 + $0xb0] sm:$0xf]
        %v1222 = vld [vmem:[%s4 + $0xb4] sm:$0xf]
        %v1223 = vld [vmem:[%s4 + $0xb8] sm:$0xf]
        %v1224 = vld [vmem:[%s4 + $0xbc] sm:$0xf]
        %v1225 = vld [vmem:[%s4 + $0xc0] sm:$0xf]
        %v1226 = vld [vmem:[%s4 + $0xc4] sm:$0xf]
        %v1227 = vld [vmem:[%s4 + $0xc8] sm:$0xf]
        %v1228 = vld [vmem:[%s4 + $0xcc] sm:$0xf]
        %v1229 = vld [vmem:[%s4 + $0xd0] sm:$0xf]
        %v1230 = vld [vmem:[%s4 + $0xd4] sm:$0xf]
        %v1231 = vld [vmem:[%s4 + $0xd8] sm:$0xf]
        %v1232 = vld [vmem:[%s4 + $0xdc] sm:$0xf]
        %v1233 = vld [vmem:[%s4 + $0xe0] sm:$0xf]
        %v1234 = vld [vmem:[%s4 + $0xe4] sm:$0xf]
        %v1235 = vld [vmem:[%s4 + $0xe8] sm:$0xf]
        %v1236 = vld [vmem:[%s4 + $0xec] sm:$0xf]
        %v1237 = vld [vmem:[%s4 + $0xf0] sm:$0xf]
        %v1238 = vld [vmem:[%s4 + $0xf4] sm:$0xf]
        %v1239 = vld [vmem:[%s4 + $0xf8] sm:$0xf]
        %v1240 = vld [vmem:[%s4 + $0xfc] sm:$0xf]
        %v1273 = vunpack.c.l.b16 %v1113
        %v1274 = vunpack.c.h.b16 %v1113
        %v1275 = vunpack.c.l.b16 %v1114
        %v1276 = vunpack.c.h.b16 %v1114
        %v1277 = vunpack.c.l.b16 %v1115
        %v1278 = vunpack.c.h.b16 %v1115
        %v1279 = vunpack.c.l.b16 %v1116
        %v1280 = vunpack.c.h.b16 %v1116
        %v1281 = vunpack.c.l.b16 %v1117
        %v1282 = vunpack.c.h.b16 %v1117
        %v1283 = vunpack.c.l.b16 %v1118
        %v1284 = vunpack.c.h.b16 %v1118
        %v1285 = vunpack.c.l.b16 %v1119
        %v1286 = vunpack.c.h.b16 %v1119
        %v1287 = vunpack.c.l.b16 %v1120
        %v1288 = vunpack.c.h.b16 %v1120
        %v1289 = vunpack.c.l.b16 %v1121
        %v1290 = vunpack.c.h.b16 %v1121
        %v1291 = vunpack.c.l.b16 %v1122
        %v1292 = vunpack.c.h.b16 %v1122
        %v1293 = vunpack.c.l.b16 %v1123
        %v1294 = vunpack.c.h.b16 %v1123
        %v1295 = vunpack.c.l.b16 %v1124
        %v1296 = vunpack.c.h.b16 %v1124
        %v1297 = vunpack.c.l.b16 %v1125
        %v1298 = vunpack.c.h.b16 %v1125
        %v1299 = vunpack.c.l.b16 %v1126
        %v1300 = vunpack.c.h.b16 %v1126
        %v1301 = vunpack.c.l.b16 %v1127
        %v1302 = vunpack.c.h.b16 %v1127
        %v1303 = vunpack.c.l.b16 %v1128
        %v1304 = vunpack.c.h.b16 %v1128
        %v1305 = vunpack.c.l.b16 %v1129
        %v1306 = vunpack.c.h.b16 %v1129
        %v1307 = vunpack.c.l.b16 %v1130
        %v1308 = vunpack.c.h.b16 %v1130
        %v1309 = vunpack.c.l.b16 %v1131
        %v1310 = vunpack.c.h.b16 %v1131
        %v1311 = vunpack.c.l.b16 %v1132
        %v1312 = vunpack.c.h.b16 %v1132
        %v1313 = vunpack.c.l.b16 %v1133
        %v1314 = vunpack.c.h.b16 %v1133
        %v1315 = vunpack.c.l.b16 %v1134
        %v1316 = vunpack.c.h.b16 %v1134
        %v1317 = vunpack.c.l.b16 %v1135
        %v1318 = vunpack.c.h.b16 %v1135
        %v1319 = vunpack.c.l.b16 %v1136
        %v1320 = vunpack.c.h.b16 %v1136
        %v1321 = vunpack.c.l.b16 %v1137
        %v1322 = vunpack.c.h.b16 %v1137
        %v1323 = vunpack.c.l.b16 %v1138
        %v1324 = vunpack.c.h.b16 %v1138
        %v1325 = vunpack.c.l.b16 %v1139
        %v1326 = vunpack.c.h.b16 %v1139
        %v1327 = vunpack.c.l.b16 %v1140
        %v1328 = vunpack.c.h.b16 %v1140
        %v1329 = vunpack.c.l.b16 %v1141
        %v1330 = vunpack.c.h.b16 %v1141
        %v1331 = vunpack.c.l.b16 %v1142
        %v1332 = vunpack.c.h.b16 %v1142
        %v1333 = vunpack.c.l.b16 %v1143
        %v1334 = vunpack.c.h.b16 %v1143
        %v1335 = vunpack.c.l.b16 %v1144
        %v1336 = vunpack.c.h.b16 %v1144
        %v1337 = vpack.c.b16 %v1277, %v1273
        %v1338 = vpack.c.b16 %v1278, %v1274
        %v1339 = vpack.c.b16 %v1279, %v1275
        %v1340 = vpack.c.b16 %v1280, %v1276
        %v1341 = vpack.c.b16 %v1285, %v1281
        %v1342 = vpack.c.b16 %v1286, %v1282
        %v1343 = vpack.c.b16 %v1287, %v1283
        %v1344 = vpack.c.b16 %v1288, %v1284
        %v1345 = vpack.c.b16 %v1293, %v1289
        %v1346 = vpack.c.b16 %v1294, %v1290
        %v1347 = vpack.c.b16 %v1295, %v1291
        %v1348 = vpack.c.b16 %v1296, %v1292
        %v1349 = vpack.c.b16 %v1301, %v1297
        %v1350 = vpack.c.b16 %v1302, %v1298
        %v1351 = vpack.c.b16 %v1303, %v1299
        %v1352 = vpack.c.b16 %v1304, %v1300
        %v1353 = vpack.c.b16 %v1309, %v1305
        %v1354 = vpack.c.b16 %v1310, %v1306
        %v1355 = vpack.c.b16 %v1311, %v1307
        %v1356 = vpack.c.b16 %v1312, %v1308
        %v1357 = vpack.c.b16 %v1317, %v1313
        %v1358 = vpack.c.b16 %v1318, %v1314
        %v1359 = vpack.c.b16 %v1319, %v1315
        %v1360 = vpack.c.b16 %v1320, %v1316
        %v1361 = vpack.c.b16 %v1325, %v1321
        %v1362 = vpack.c.b16 %v1326, %v1322
        %v1363 = vpack.c.b16 %v1327, %v1323
        %v1364 = vpack.c.b16 %v1328, %v1324
        %v1365 = vpack.c.b16 %v1333, %v1329
        %v1366 = vpack.c.b16 %v1334, %v1330
        %v1367 = vpack.c.b16 %v1335, %v1331
        %v1368 = vpack.c.b16 %v1336, %v1332
        %v1465 = vunpack.c.l.b16 %v1177
        %v1466 = vunpack.c.l.b16 %v1178
        %v1467 = vunpack.c.l.b16 %v1179
        %v1468 = vunpack.c.l.b16 %v1180
        %v1469 = vunpack.c.l.b16 %v1181
        %v1470 = vunpack.c.l.b16 %v1182
        %v1471 = vunpack.c.l.b16 %v1183
        %v1472 = vunpack.c.l.b16 %v1184
        %v1473 = vunpack.c.l.b16 %v1185
        %v1474 = vunpack.c.l.b16 %v1186
        %v1475 = vunpack.c.l.b16 %v1187
        %v1476 = vunpack.c.l.b16 %v1188
        %v1477 = vunpack.c.l.b16 %v1189
        %v1478 = vunpack.c.l.b16 %v1190
        %v1479 = vunpack.c.l.b16 %v1191
        %v1480 = vunpack.c.l.b16 %v1192
        %v1481 = vunpack.c.l.b16 %v1193
        %v1482 = vunpack.c.l.b16 %v1194
        %v1483 = vunpack.c.l.b16 %v1195
        %v1484 = vunpack.c.l.b16 %v1196
        %v1485 = vunpack.c.l.b16 %v1197
        %v1486 = vunpack.c.l.b16 %v1198
        %v1487 = vunpack.c.l.b16 %v1199
        %v1488 = vunpack.c.l.b16 %v1200
        %v1489 = vunpack.c.l.b16 %v1201
        %v1490 = vunpack.c.l.b16 %v1202
        %v1491 = vunpack.c.l.b16 %v1203
        %v1492 = vunpack.c.l.b16 %v1204
        %v1493 = vunpack.c.l.b16 %v1205
        %v1494 = vunpack.c.l.b16 %v1206
        %v1495 = vunpack.c.l.b16 %v1207
        %v1496 = vunpack.c.l.b16 %v1208
        %v1497 = vunpack.c.l.b16 %v1209
        %v1498 = vunpack.c.l.b16 %v1210
        %v1499 = vunpack.c.l.b16 %v1211
        %v1500 = vunpack.c.l.b16 %v1212
        %v1501 = vunpack.c.l.b16 %v1213
        %v1502 = vunpack.c.l.b16 %v1214
        %v1503 = vunpack.c.l.b16 %v1215
        %v1504 = vunpack.c.l.b16 %v1216
        %v1505 = vunpack.c.l.b16 %v1217
        %v1506 = vunpack.c.l.b16 %v1218
        %v1507 = vunpack.c.l.b16 %v1219
        %v1508 = vunpack.c.l.b16 %v1220
        %v1509 = vunpack.c.l.b16 %v1221
        %v1510 = vunpack.c.l.b16 %v1222
        %v1511 = vunpack.c.l.b16 %v1223
        %v1512 = vunpack.c.l.b16 %v1224
        %v1513 = vunpack.c.l.b16 %v1225
        %v1514 = vunpack.c.l.b16 %v1226
        %v1515 = vunpack.c.l.b16 %v1227
        %v1516 = vunpack.c.l.b16 %v1228
        %v1517 = vunpack.c.l.b16 %v1229
        %v1518 = vunpack.c.l.b16 %v1230
        %v1519 = vunpack.c.l.b16 %v1231
        %v1520 = vunpack.c.l.b16 %v1232
        %v1521 = vunpack.c.l.b16 %v1233
        %v1522 = vunpack.c.l.b16 %v1234
        %v1523 = vunpack.c.l.b16 %v1235
        %v1524 = vunpack.c.l.b16 %v1236
        %v1525 = vunpack.c.l.b16 %v1237
        %v1526 = vunpack.c.l.b16 %v1238
        %v1527 = vunpack.c.l.b16 %v1239
        %v1528 = vunpack.c.l.b16 %v1240
        %v1529 = vpack.c.b16 %v1466, %v1465
        %v1530 = vpack.c.b16 %v1468, %v1467
        %v1531 = vpack.c.b16 %v1470, %v1469
        %v1532 = vpack.c.b16 %v1472, %v1471
        %v1533 = vpack.c.b16 %v1474, %v1473
        %v1534 = vpack.c.b16 %v1476, %v1475
        %v1535 = vpack.c.b16 %v1478, %v1477
        %v1536 = vpack.c.b16 %v1480, %v1479
        %v1537 = vpack.c.b16 %v1482, %v1481
        %v1538 = vpack.c.b16 %v1484, %v1483
        %v1539 = vpack.c.b16 %v1486, %v1485
        %v1540 = vpack.c.b16 %v1488, %v1487
        %v1541 = vpack.c.b16 %v1490, %v1489
        %v1542 = vpack.c.b16 %v1492, %v1491
        %v1543 = vpack.c.b16 %v1494, %v1493
        %v1544 = vpack.c.b16 %v1496, %v1495
        %v1545 = vpack.c.b16 %v1498, %v1497
        %v1546 = vpack.c.b16 %v1500, %v1499
        %v1547 = vpack.c.b16 %v1502, %v1501
        %v1548 = vpack.c.b16 %v1504, %v1503
        %v1549 = vpack.c.b16 %v1506, %v1505
        %v1550 = vpack.c.b16 %v1508, %v1507
        %v1551 = vpack.c.b16 %v1510, %v1509
        %v1552 = vpack.c.b16 %v1512, %v1511
        %v1553 = vpack.c.b16 %v1514, %v1513
        %v1554 = vpack.c.b16 %v1516, %v1515
        %v1555 = vpack.c.b16 %v1518, %v1517
        %v1556 = vpack.c.b16 %v1520, %v1519
        %v1557 = vpack.c.b16 %v1522, %v1521
        %v1558 = vpack.c.b16 %v1524, %v1523
        %v1559 = vpack.c.b16 %v1526, %v1525
        %v1560 = vpack.c.b16 %v1528, %v1527
        %1593 = vmatpush.bf16.msra.mxu0 %v1536
        %1594 = vmatpush.bf16.msra.mxu0 %v1535
        %1595 = vmatpush.bf16.msra.mxu0 %v1534
        %1596 = vmatpush.bf16.msra.mxu0 %v1533
        %1597 = vmatpush.bf16.msra.mxu0 %v1532
        %1598 = vmatpush.bf16.msra.mxu0 %v1531
        %1599 = vmatpush.bf16.msra.mxu0 %v1530
        %1600 = vmatpush.bf16.msra.mxu0 %v1529
        %1601 = vmatmul.bf16.gmra.mxu0 %v1337
        %v1602 = vpop.f32.mrf.mxu0
        %v1603 = vadd.f32 0.0, %v1602
        %v1604 = vpop.f32.mrf.mxu0
        %v1605 = vadd.f32 0.0, %v1604
        %1606 = vmatmul.bf16.gmra.mxu0 %v1341
        %v1607 = vpop.f32.mrf.mxu0
        %v1608 = vadd.f32 0.0, %v1607
        %v1609 = vpop.f32.mrf.mxu0
        %v1610 = vadd.f32 0.0, %v1609
        %1611 = vmatmul.bf16.gmra.mxu0 %v1345
        %v1612 = vpop.f32.mrf.mxu0
        %v1613 = vadd.f32 0.0, %v1612
        %v1614 = vpop.f32.mrf.mxu0
        %v1615 = vadd.f32 0.0, %v1614
        %1616 = vmatmul.bf16.gmra.mxu0 %v1349
        %v1617 = vpop.f32.mrf.mxu0
        %v1618 = vadd.f32 0.0, %v1617
        %v1619 = vpop.f32.mrf.mxu0
        %v1620 = vadd.f32 0.0, %v1619
        %1621 = vmatmul.bf16.gmra.mxu0 %v1353
        %v1622 = vpop.f32.mrf.mxu0
        %v1623 = vadd.f32 0.0, %v1622
        %v1624 = vpop.f32.mrf.mxu0
        %v1625 = vadd.f32 0.0, %v1624
        %1626 = vmatmul.bf16.gmra.mxu0 %v1357
        %v1627 = vpop.f32.mrf.mxu0
        %v1628 = vadd.f32 0.0, %v1627
        %v1629 = vpop.f32.mrf.mxu0
        %v1630 = vadd.f32 0.0, %v1629
        %1631 = vmatmul.bf16.gmra.mxu0 %v1361
        %v1632 = vpop.f32.mrf.mxu0
        %v1633 = vadd.f32 0.0, %v1632
        %v1634 = vpop.f32.mrf.mxu0
        %v1635 = vadd.f32 0.0, %v1634
        %1636 = vmatmul.bf16.gmra.mxu0 %v1365
        %v1637 = vpop.f32.mrf.mxu0
        %v1638 = vadd.f32 0.0, %v1637
        %v1639 = vpop.f32.mrf.mxu0
        %v1640 = vadd.f32 0.0, %v1639
        %1641 = vdwg.mxu0
        %1642 = vmatpush.bf16.msra.mxu0 %v1544
        %1643 = vmatpush.bf16.msra.mxu0 %v1543
        %1644 = vmatpush.bf16.msra.mxu0 %v1542
        %1645 = vmatpush.bf16.msra.mxu0 %v1541
        %1646 = vmatpush.bf16.msra.mxu0 %v1540
        %1647 = vmatpush.bf16.msra.mxu0 %v1539
        %1648 = vmatpush.bf16.msra.mxu0 %v1538
        %1649 = vmatpush.bf16.msra.mxu0 %v1537
        %1650 = vmatmul.bf16.gmra.mxu0 %v1338
        %v1651 = vpop.f32.mrf.mxu0
        %v1652 = vadd.f32 %v1603, %v1651
        %v1653 = vpop.f32.mrf.mxu0
        %v1654 = vadd.f32 %v1605, %v1653
        %1655 = vmatmul.bf16.gmra.mxu0 %v1342
        %v1656 = vpop.f32.mrf.mxu0
        %v1657 = vadd.f32 %v1608, %v1656
        %v1658 = vpop.f32.mrf.mxu0
        %v1659 = vadd.f32 %v1610, %v1658
        %1660 = vmatmul.bf16.gmra.mxu0 %v1346
        %v1661 = vpop.f32.mrf.mxu0
        %v1662 = vadd.f32 %v1613, %v1661
        %v1663 = vpop.f32.mrf.mxu0
        %v1664 = vadd.f32 %v1615, %v1663
        %1665 = vmatmul.bf16.gmra.mxu0 %v1350
        %v1666 = vpop.f32.mrf.mxu0
        %v1667 = vadd.f32 %v1618, %v1666
        %v1668 = vpop.f32.mrf.mxu0
        %v1669 = vadd.f32 %v1620, %v1668
        %1670 = vmatmul.bf16.gmra.mxu0 %v1354
        %v1671 = vpop.f32.mrf.mxu0
        %v1672 = vadd.f32 %v1623, %v1671
        %v1673 = vpop.f32.mrf.mxu0
        %v1674 = vadd.f32 %v1625, %v1673
        %1675 = vmatmul.bf16.gmra.mxu0 %v1358
        %v1676 = vpop.f32.mrf.mxu0
        %v1677 = vadd.f32 %v1628, %v1676
        %v1678 = vpop.f32.mrf.mxu0
        %v1679 = vadd.f32 %v1630, %v1678
        %1680 = vmatmul.bf16.gmra.mxu0 %v1362
        %v1681 = vpop.f32.mrf.mxu0
        %v1682 = vadd.f32 %v1633, %v1681
        %v1683 = vpop.f32.mrf.mxu0
        %v1684 = vadd.f32 %v1635, %v1683
        %1685 = vmatmul.bf16.gmra.mxu0 %v1366
        %v1686 = vpop.f32.mrf.mxu0
        %v1687 = vadd.f32 %v1638, %v1686
        %v1688 = vpop.f32.mrf.mxu0
        %v1689 = vadd.f32 %v1640, %v1688
        %1690 = vdwg.mxu0
        %1691 = vmatpush.bf16.msra.mxu0 %v1552
        %1692 = vmatpush.bf16.msra.mxu0 %v1551
        %1693 = vmatpush.bf16.msra.mxu0 %v1550
        %1694 = vmatpush.bf16.msra.mxu0 %v1549
        %1695 = vmatpush.bf16.msra.mxu0 %v1548
        %1696 = vmatpush.bf16.msra.mxu0 %v1547
        %1697 = vmatpush.bf16.msra.mxu0 %v1546
        %1698 = vmatpush.bf16.msra.mxu0 %v1545
        %1699 = vmatmul.bf16.gmra.mxu0 %v1339
        %v1700 = vpop.f32.mrf.mxu0
        %v1701 = vadd.f32 %v1652, %v1700
        %v1702 = vpop.f32.mrf.mxu0
        %v1703 = vadd.f32 %v1654, %v1702
        %1704 = vmatmul.bf16.gmra.mxu0 %v1343
        %v1705 = vpop.f32.mrf.mxu0
        %v1706 = vadd.f32 %v1657, %v1705
        %v1707 = vpop.f32.mrf.mxu0
        %v1708 = vadd.f32 %v1659, %v1707
        %1709 = vmatmul.bf16.gmra.mxu0 %v1347
        %v1710 = vpop.f32.mrf.mxu0
        %v1711 = vadd.f32 %v1662, %v1710
        %v1712 = vpop.f32.mrf.mxu0
        %v1713 = vadd.f32 %v1664, %v1712
        %1714 = vmatmul.bf16.gmra.mxu0 %v1351
        %v1715 = vpop.f32.mrf.mxu0
        %v1716 = vadd.f32 %v1667, %v1715
        %v1717 = vpop.f32.mrf.mxu0
        %v1718 = vadd.f32 %v1669, %v1717
        %1719 = vmatmul.bf16.gmra.mxu0 %v1355
        %v1720 = vpop.f32.mrf.mxu0
        %v1721 = vadd.f32 %v1672, %v1720
        %v1722 = vpop.f32.mrf.mxu0
        %v1723 = vadd.f32 %v1674, %v1722
        %1724 = vmatmul.bf16.gmra.mxu0 %v1359
        %v1725 = vpop.f32.mrf.mxu0
        %v1726 = vadd.f32 %v1677, %v1725
        %v1727 = vpop.f32.mrf.mxu0
        %v1728 = vadd.f32 %v1679, %v1727
        %1729 = vmatmul.bf16.gmra.mxu0 %v1363
        %v1730 = vpop.f32.mrf.mxu0
        %v1731 = vadd.f32 %v1682, %v1730
        %v1732 = vpop.f32.mrf.mxu0
        %v1733 = vadd.f32 %v1684, %v1732
        %1734 = vmatmul.bf16.gmra.mxu0 %v1367
        %v1735 = vpop.f32.mrf.mxu0
        %v1736 = vadd.f32 %v1687, %v1735
        %v1737 = vpop.f32.mrf.mxu0
        %v1738 = vadd.f32 %v1689, %v1737
        %1739 = vdwg.mxu0
        %1740 = vmatpush.bf16.msra.mxu0 %v1560
        %1741 = vmatpush.bf16.msra.mxu0 %v1559
        %1742 = vmatpush.bf16.msra.mxu0 %v1558
        %1743 = vmatpush.bf16.msra.mxu0 %v1557
        %1744 = vmatpush.bf16.msra.mxu0 %v1556
        %1745 = vmatpush.bf16.msra.mxu0 %v1555
        %1746 = vmatpush.bf16.msra.mxu0 %v1554
        %1747 = vmatpush.bf16.msra.mxu0 %v1553
        %1748 = vmatmul.bf16.gmra.mxu0 %v1340
        %v1749 = vpop.f32.mrf.mxu0
        %v1750 = vadd.f32 %v1701, %v1749
        %v1751 = vpop.f32.mrf.mxu0
        %v1752 = vadd.f32 %v1703, %v1751
        %1753 = vmatmul.bf16.gmra.mxu0 %v1344
        %v1754 = vpop.f32.mrf.mxu0
        %v1755 = vadd.f32 %v1706, %v1754
        %v1756 = vpop.f32.mrf.mxu0
        %v1757 = vadd.f32 %v1708, %v1756
        %1758 = vmatmul.bf16.gmra.mxu0 %v1348
        %v1759 = vpop.f32.mrf.mxu0
        %v1760 = vadd.f32 %v1711, %v1759
        %v1761 = vpop.f32.mrf.mxu0
        %v1762 = vadd.f32 %v1713, %v1761
        %1763 = vmatmul.bf16.gmra.mxu0 %v1352
        %v1764 = vpop.f32.mrf.mxu0
        %v1765 = vadd.f32 %v1716, %v1764
        %v1766 = vpop.f32.mrf.mxu0
        %v1767 = vadd.f32 %v1718, %v1766
        %1768 = vmatmul.bf16.gmra.mxu0 %v1356
        %v1769 = vpop.f32.mrf.mxu0
        %v1770 = vadd.f32 %v1721, %v1769
        %v1771 = vpop.f32.mrf.mxu0
        %v1772 = vadd.f32 %v1723, %v1771
        %1773 = vmatmul.bf16.gmra.mxu0 %v1360
        %v1774 = vpop.f32.mrf.mxu0
        %v1775 = vadd.f32 %v1726, %v1774
        %v1776 = vpop.f32.mrf.mxu0
        %v1777 = vadd.f32 %v1728, %v1776
        %1778 = vmatmul.bf16.gmra.mxu0 %v1364
        %v1779 = vpop.f32.mrf.mxu0
        %v1780 = vadd.f32 %v1731, %v1779
        %v1781 = vpop.f32.mrf.mxu0
        %v1782 = vadd.f32 %v1733, %v1781
        %1783 = vmatmul.bf16.gmra.mxu0 %v1368
        %v1784 = vpop.f32.mrf.mxu0
        %v1785 = vadd.f32 %v1736, %v1784
        %v1786 = vpop.f32.mrf.mxu0
        %v1787 = vadd.f32 %v1738, %v1786
        %1788 = vdwg.mxu0
        %vm1789 = vcmask 64512
        %1790 = vst.msk [vmem:[%s326] sm:$0xff] %vm1789, %v1750
        %1791 = vst.msk [vmem:[%s326 + $0x8] sm:$0xff] %vm1789, %v1752
        %1792 = vst.msk [vmem:[%s326 + $0x10] sm:$0xff] %vm1789, %v1755
        %1793 = vst.msk [vmem:[%s326 + $0x18] sm:$0xff] %vm1789, %v1757
        %1794 = vst.msk [vmem:[%s326 + $0x20] sm:$0xff] %vm1789, %v1760
        %1795 = vst.msk [vmem:[%s326 + $0x28] sm:$0xff] %vm1789, %v1762
        %1796 = vst.msk [vmem:[%s326 + $0x30] sm:$0xff] %vm1789, %v1765
        %1797 = vst.msk [vmem:[%s326 + $0x38] sm:$0xff] %vm1789, %v1767
        %1798 = vst.msk [vmem:[%s326 + $0x40] sm:$0xff] %vm1789, %v1770
        %1799 = vst.msk [vmem:[%s326 + $0x48] sm:$0xff] %vm1789, %v1772
        %1800 = vst.msk [vmem:[%s326 + $0x50] sm:$0xff] %vm1789, %v1775
        %1801 = vst.msk [vmem:[%s326 + $0x58] sm:$0xff] %vm1789, %v1777
        %1802 = vst.msk [vmem:[%s326 + $0x60] sm:$0xff] %vm1789, %v1780
        %1803 = vst.msk [vmem:[%s326 + $0x68] sm:$0xff] %vm1789, %v1782
        %1804 = vst.msk [vmem:[%s326 + $0x70] sm:$0xff] %vm1789, %v1785
        %1805 = vst.msk [vmem:[%s326 + $0x78] sm:$0xff] %vm1789, %v1787
        %v1806 = vld [vmem:[%s5] sm:$0xf]
        %v1807 = vld [vmem:[%s5 + $0x4] sm:$0xf]
        %v1808 = vld [vmem:[%s5 + $0x8] sm:$0xf]
        %v1809 = vld [vmem:[%s5 + $0xc] sm:$0xf]
        %v1810 = vld [vmem:[%s5 + $0x10] sm:$0xf]
        %v1811 = vld [vmem:[%s5 + $0x14] sm:$0xf]
        %v1812 = vld [vmem:[%s5 + $0x18] sm:$0xf]
        %v1813 = vld [vmem:[%s5 + $0x1c] sm:$0xf]
        %v1814 = vld [vmem:[%s5 + $0x20] sm:$0xf]
        %v1815 = vld [vmem:[%s5 + $0x24] sm:$0xf]
        %v1816 = vld [vmem:[%s5 + $0x28] sm:$0xf]
        %v1817 = vld [vmem:[%s5 + $0x2c] sm:$0xf]
        %v1818 = vld [vmem:[%s5 + $0x30] sm:$0xf]
        %v1819 = vld [vmem:[%s5 + $0x34] sm:$0xf]
        %v1820 = vld [vmem:[%s5 + $0x38] sm:$0xf]
        %v1821 = vld [vmem:[%s5 + $0x3c] sm:$0xf]
        %v1822 = vld [vmem:[%s5 + $0x40] sm:$0xf]
        %v1823 = vld [vmem:[%s5 + $0x44] sm:$0xf]
        %v1824 = vld [vmem:[%s5 + $0x48] sm:$0xf]
        %v1825 = vld [vmem:[%s5 + $0x4c] sm:$0xf]
        %v1826 = vld [vmem:[%s5 + $0x50] sm:$0xf]
        %v1827 = vld [vmem:[%s5 + $0x54] sm:$0xf]
        %v1828 = vld [vmem:[%s5 + $0x58] sm:$0xf]
        %v1829 = vld [vmem:[%s5 + $0x5c] sm:$0xf]
        %v1830 = vld [vmem:[%s5 + $0x60] sm:$0xf]
        %v1831 = vld [vmem:[%s5 + $0x64] sm:$0xf]
        %v1832 = vld [vmem:[%s5 + $0x68] sm:$0xf]
        %v1833 = vld [vmem:[%s5 + $0x6c] sm:$0xf]
        %v1834 = vld [vmem:[%s5 + $0x70] sm:$0xf]
        %v1835 = vld [vmem:[%s5 + $0x74] sm:$0xf]
        %v1836 = vld [vmem:[%s5 + $0x78] sm:$0xf]
        %v1837 = vld [vmem:[%s5 + $0x7c] sm:$0xf]
        %v1838 = vld [vmem:[%s5 + $0x80] sm:$0xf]
        %v1839 = vld [vmem:[%s5 + $0x84] sm:$0xf]
        %v1840 = vld [vmem:[%s5 + $0x88] sm:$0xf]
        %v1841 = vld [vmem:[%s5 + $0x8c] sm:$0xf]
        %v1842 = vld [vmem:[%s5 + $0x90] sm:$0xf]
        %v1843 = vld [vmem:[%s5 + $0x94] sm:$0xf]
        %v1844 = vld [vmem:[%s5 + $0x98] sm:$0xf]
        %v1845 = vld [vmem:[%s5 + $0x9c] sm:$0xf]
        %v1846 = vld [vmem:[%s5 + $0xa0] sm:$0xf]
        %v1847 = vld [vmem:[%s5 + $0xa4] sm:$0xf]
        %v1848 = vld [vmem:[%s5 + $0xa8] sm:$0xf]
        %v1849 = vld [vmem:[%s5 + $0xac] sm:$0xf]
        %v1850 = vld [vmem:[%s5 + $0xb0] sm:$0xf]
        %v1851 = vld [vmem:[%s5 + $0xb4] sm:$0xf]
        %v1852 = vld [vmem:[%s5 + $0xb8] sm:$0xf]
        %v1853 = vld [vmem:[%s5 + $0xbc] sm:$0xf]
        %v1854 = vld [vmem:[%s5 + $0xc0] sm:$0xf]
        %v1855 = vld [vmem:[%s5 + $0xc4] sm:$0xf]
        %v1856 = vld [vmem:[%s5 + $0xc8] sm:$0xf]
        %v1857 = vld [vmem:[%s5 + $0xcc] sm:$0xf]
        %v1858 = vld [vmem:[%s5 + $0xd0] sm:$0xf]
        %v1859 = vld [vmem:[%s5 + $0xd4] sm:$0xf]
        %v1860 = vld [vmem:[%s5 + $0xd8] sm:$0xf]
        %v1861 = vld [vmem:[%s5 + $0xdc] sm:$0xf]
        %v1862 = vld [vmem:[%s5 + $0xe0] sm:$0xf]
        %v1863 = vld [vmem:[%s5 + $0xe4] sm:$0xf]
        %v1864 = vld [vmem:[%s5 + $0xe8] sm:$0xf]
        %v1865 = vld [vmem:[%s5 + $0xec] sm:$0xf]
        %v1866 = vld [vmem:[%s5 + $0xf0] sm:$0xf]
        %v1867 = vld [vmem:[%s5 + $0xf4] sm:$0xf]
        %v1868 = vld [vmem:[%s5 + $0xf8] sm:$0xf]
        %v1869 = vld [vmem:[%s5 + $0xfc] sm:$0xf]
        %v1934 = vunpack.c.l.b16 %v1806
        %v1935 = vunpack.c.l.b16 %v1807
        %v1936 = vunpack.c.l.b16 %v1808
        %v1937 = vunpack.c.l.b16 %v1809
        %v1938 = vunpack.c.l.b16 %v1810
        %v1939 = vunpack.c.l.b16 %v1811
        %v1940 = vunpack.c.l.b16 %v1812
        %v1941 = vunpack.c.l.b16 %v1813
        %v1942 = vunpack.c.l.b16 %v1814
        %v1943 = vunpack.c.l.b16 %v1815
        %v1944 = vunpack.c.l.b16 %v1816
        %v1945 = vunpack.c.l.b16 %v1817
        %v1946 = vunpack.c.l.b16 %v1818
        %v1947 = vunpack.c.l.b16 %v1819
        %v1948 = vunpack.c.l.b16 %v1820
        %v1949 = vunpack.c.l.b16 %v1821
        %v1950 = vunpack.c.l.b16 %v1822
        %v1951 = vunpack.c.l.b16 %v1823
        %v1952 = vunpack.c.l.b16 %v1824
        %v1953 = vunpack.c.l.b16 %v1825
        %v1954 = vunpack.c.l.b16 %v1826
        %v1955 = vunpack.c.l.b16 %v1827
        %v1956 = vunpack.c.l.b16 %v1828
        %v1957 = vunpack.c.l.b16 %v1829
        %v1958 = vunpack.c.l.b16 %v1830
        %v1959 = vunpack.c.l.b16 %v1831
        %v1960 = vunpack.c.l.b16 %v1832
        %v1961 = vunpack.c.l.b16 %v1833
        %v1962 = vunpack.c.l.b16 %v1834
        %v1963 = vunpack.c.l.b16 %v1835
        %v1964 = vunpack.c.l.b16 %v1836
        %v1965 = vunpack.c.l.b16 %v1837
        %v1966 = vunpack.c.l.b16 %v1838
        %v1967 = vunpack.c.l.b16 %v1839
        %v1968 = vunpack.c.l.b16 %v1840
        %v1969 = vunpack.c.l.b16 %v1841
        %v1970 = vunpack.c.l.b16 %v1842
        %v1971 = vunpack.c.l.b16 %v1843
        %v1972 = vunpack.c.l.b16 %v1844
        %v1973 = vunpack.c.l.b16 %v1845
        %v1974 = vunpack.c.l.b16 %v1846
        %v1975 = vunpack.c.l.b16 %v1847
        %v1976 = vunpack.c.l.b16 %v1848
        %v1977 = vunpack.c.l.b16 %v1849
        %v1978 = vunpack.c.l.b16 %v1850
        %v1979 = vunpack.c.l.b16 %v1851
        %v1980 = vunpack.c.l.b16 %v1852
        %v1981 = vunpack.c.l.b16 %v1853
        %v1982 = vunpack.c.l.b16 %v1854
        %v1983 = vunpack.c.l.b16 %v1855
        %v1984 = vunpack.c.l.b16 %v1856
        %v1985 = vunpack.c.l.b16 %v1857
        %v1986 = vunpack.c.l.b16 %v1858
        %v1987 = vunpack.c.l.b16 %v1859
        %v1988 = vunpack.c.l.b16 %v1860
        %v1989 = vunpack.c.l.b16 %v1861
        %v1990 = vunpack.c.l.b16 %v1862
        %v1991 = vunpack.c.l.b16 %v1863
        %v1992 = vunpack.c.l.b16 %v1864
        %v1993 = vunpack.c.l.b16 %v1865
        %v1994 = vunpack.c.l.b16 %v1866
        %v1995 = vunpack.c.l.b16 %v1867
        %v1996 = vunpack.c.l.b16 %v1868
        %v1997 = vunpack.c.l.b16 %v1869
        %v1998 = vpack.c.b16 %v1935, %v1934
        %v1999 = vpack.c.b16 %v1937, %v1936
        %v2000 = vpack.c.b16 %v1939, %v1938
        %v2001 = vpack.c.b16 %v1941, %v1940
        %v2002 = vpack.c.b16 %v1943, %v1942
        %v2003 = vpack.c.b16 %v1945, %v1944
        %v2004 = vpack.c.b16 %v1947, %v1946
        %v2005 = vpack.c.b16 %v1949, %v1948
        %v2006 = vpack.c.b16 %v1951, %v1950
        %v2007 = vpack.c.b16 %v1953, %v1952
        %v2008 = vpack.c.b16 %v1955, %v1954
        %v2009 = vpack.c.b16 %v1957, %v1956
        %v2010 = vpack.c.b16 %v1959, %v1958
        %v2011 = vpack.c.b16 %v1961, %v1960
        %v2012 = vpack.c.b16 %v1963, %v1962
        %v2013 = vpack.c.b16 %v1965, %v1964
        %v2014 = vpack.c.b16 %v1967, %v1966
        %v2015 = vpack.c.b16 %v1969, %v1968
        %v2016 = vpack.c.b16 %v1971, %v1970
        %v2017 = vpack.c.b16 %v1973, %v1972
        %v2018 = vpack.c.b16 %v1975, %v1974
        %v2019 = vpack.c.b16 %v1977, %v1976
        %v2020 = vpack.c.b16 %v1979, %v1978
        %v2021 = vpack.c.b16 %v1981, %v1980
        %v2022 = vpack.c.b16 %v1983, %v1982
        %v2023 = vpack.c.b16 %v1985, %v1984
        %v2024 = vpack.c.b16 %v1987, %v1986
        %v2025 = vpack.c.b16 %v1989, %v1988
        %v2026 = vpack.c.b16 %v1991, %v1990
        %v2027 = vpack.c.b16 %v1993, %v1992
        %v2028 = vpack.c.b16 %v1995, %v1994
        %v2029 = vpack.c.b16 %v1997, %v1996
        %2062 = vmatpush.bf16.msra.mxu0 %v2005
        %2063 = vmatpush.bf16.msra.mxu0 %v2004
        %2064 = vmatpush.bf16.msra.mxu0 %v2003
        %2065 = vmatpush.bf16.msra.mxu0 %v2002
        %2066 = vmatpush.bf16.msra.mxu0 %v2001
        %2067 = vmatpush.bf16.msra.mxu0 %v2000
        %2068 = vmatpush.bf16.msra.mxu0 %v1999
        %2069 = vmatpush.bf16.msra.mxu0 %v1998
        %2070 = vmatmul.bf16.gmra.mxu0 %v1337
        %v2071 = vpop.f32.mrf.mxu0
        %v2072 = vadd.f32 0.0, %v2071
        %v2073 = vpop.f32.mrf.mxu0
        %v2074 = vadd.f32 0.0, %v2073
        %2075 = vmatmul.bf16.gmra.mxu0 %v1341
        %v2076 = vpop.f32.mrf.mxu0
        %v2077 = vadd.f32 0.0, %v2076
        %v2078 = vpop.f32.mrf.mxu0
        %v2079 = vadd.f32 0.0, %v2078
        %2080 = vmatmul.bf16.gmra.mxu0 %v1345
        %v2081 = vpop.f32.mrf.mxu0
        %v2082 = vadd.f32 0.0, %v2081
        %v2083 = vpop.f32.mrf.mxu0
        %v2084 = vadd.f32 0.0, %v2083
        %2085 = vmatmul.bf16.gmra.mxu0 %v1349
        %v2086 = vpop.f32.mrf.mxu0
        %v2087 = vadd.f32 0.0, %v2086
        %v2088 = vpop.f32.mrf.mxu0
        %v2089 = vadd.f32 0.0, %v2088
        %2090 = vmatmul.bf16.gmra.mxu0 %v1353
        %v2091 = vpop.f32.mrf.mxu0
        %v2092 = vadd.f32 0.0, %v2091
        %v2093 = vpop.f32.mrf.mxu0
        %v2094 = vadd.f32 0.0, %v2093
        %2095 = vmatmul.bf16.gmra.mxu0 %v1357
        %v2096 = vpop.f32.mrf.mxu0
        %v2097 = vadd.f32 0.0, %v2096
        %v2098 = vpop.f32.mrf.mxu0
        %v2099 = vadd.f32 0.0, %v2098
        %2100 = vmatmul.bf16.gmra.mxu0 %v1361
        %v2101 = vpop.f32.mrf.mxu0
        %v2102 = vadd.f32 0.0, %v2101
        %v2103 = vpop.f32.mrf.mxu0
        %v2104 = vadd.f32 0.0, %v2103
        %2105 = vmatmul.bf16.gmra.mxu0 %v1365
        %v2106 = vpop.f32.mrf.mxu0
        %v2107 = vadd.f32 0.0, %v2106
        %v2108 = vpop.f32.mrf.mxu0
        %v2109 = vadd.f32 0.0, %v2108
        %2110 = vdwg.mxu0
        %2111 = vmatpush.bf16.msra.mxu0 %v2013
        %2112 = vmatpush.bf16.msra.mxu0 %v2012
        %2113 = vmatpush.bf16.msra.mxu0 %v2011
        %2114 = vmatpush.bf16.msra.mxu0 %v2010
        %2115 = vmatpush.bf16.msra.mxu0 %v2009
        %2116 = vmatpush.bf16.msra.mxu0 %v2008
        %2117 = vmatpush.bf16.msra.mxu0 %v2007
        %2118 = vmatpush.bf16.msra.mxu0 %v2006
        %2119 = vmatmul.bf16.gmra.mxu0 %v1338
        %v2120 = vpop.f32.mrf.mxu0
        %v2121 = vadd.f32 %v2072, %v2120
        %v2122 = vpop.f32.mrf.mxu0
        %v2123 = vadd.f32 %v2074, %v2122
        %2124 = vmatmul.bf16.gmra.mxu0 %v1342
        %v2125 = vpop.f32.mrf.mxu0
        %v2126 = vadd.f32 %v2077, %v2125
        %v2127 = vpop.f32.mrf.mxu0
        %v2128 = vadd.f32 %v2079, %v2127
        %2129 = vmatmul.bf16.gmra.mxu0 %v1346
        %v2130 = vpop.f32.mrf.mxu0
        %v2131 = vadd.f32 %v2082, %v2130
        %v2132 = vpop.f32.mrf.mxu0
        %v2133 = vadd.f32 %v2084, %v2132
        %2134 = vmatmul.bf16.gmra.mxu0 %v1350
        %v2135 = vpop.f32.mrf.mxu0
        %v2136 = vadd.f32 %v2087, %v2135
        %v2137 = vpop.f32.mrf.mxu0
        %v2138 = vadd.f32 %v2089, %v2137
        %2139 = vmatmul.bf16.gmra.mxu0 %v1354
        %v2140 = vpop.f32.mrf.mxu0
        %v2141 = vadd.f32 %v2092, %v2140
        %v2142 = vpop.f32.mrf.mxu0
        %v2143 = vadd.f32 %v2094, %v2142
        %2144 = vmatmul.bf16.gmra.mxu0 %v1358
        %v2145 = vpop.f32.mrf.mxu0
        %v2146 = vadd.f32 %v2097, %v2145
        %v2147 = vpop.f32.mrf.mxu0
        %v2148 = vadd.f32 %v2099, %v2147
        %2149 = vmatmul.bf16.gmra.mxu0 %v1362
        %v2150 = vpop.f32.mrf.mxu0
        %v2151 = vadd.f32 %v2102, %v2150
        %v2152 = vpop.f32.mrf.mxu0
        %v2153 = vadd.f32 %v2104, %v2152
        %2154 = vmatmul.bf16.gmra.mxu0 %v1366
        %v2155 = vpop.f32.mrf.mxu0
        %v2156 = vadd.f32 %v2107, %v2155
        %v2157 = vpop.f32.mrf.mxu0
        %v2158 = vadd.f32 %v2109, %v2157
        %2159 = vdwg.mxu0
        %2160 = vmatpush.bf16.msra.mxu0 %v2021
        %2161 = vmatpush.bf16.msra.mxu0 %v2020
        %2162 = vmatpush.bf16.msra.mxu0 %v2019
        %2163 = vmatpush.bf16.msra.mxu0 %v2018
        %2164 = vmatpush.bf16.msra.mxu0 %v2017
        %2165 = vmatpush.bf16.msra.mxu0 %v2016
        %2166 = vmatpush.bf16.msra.mxu0 %v2015
        %2167 = vmatpush.bf16.msra.mxu0 %v2014
        %2168 = vmatmul.bf16.gmra.mxu0 %v1339
        %v2169 = vpop.f32.mrf.mxu0
        %v2170 = vadd.f32 %v2121, %v2169
        %v2171 = vpop.f32.mrf.mxu0
        %v2172 = vadd.f32 %v2123, %v2171
        %2173 = vmatmul.bf16.gmra.mxu0 %v1343
        %v2174 = vpop.f32.mrf.mxu0
        %v2175 = vadd.f32 %v2126, %v2174
        %v2176 = vpop.f32.mrf.mxu0
        %v2177 = vadd.f32 %v2128, %v2176
        %2178 = vmatmul.bf16.gmra.mxu0 %v1347
        %v2179 = vpop.f32.mrf.mxu0
        %v2180 = vadd.f32 %v2131, %v2179
        %v2181 = vpop.f32.mrf.mxu0
        %v2182 = vadd.f32 %v2133, %v2181
        %2183 = vmatmul.bf16.gmra.mxu0 %v1351
        %v2184 = vpop.f32.mrf.mxu0
        %v2185 = vadd.f32 %v2136, %v2184
        %v2186 = vpop.f32.mrf.mxu0
        %v2187 = vadd.f32 %v2138, %v2186
        %2188 = vmatmul.bf16.gmra.mxu0 %v1355
        %v2189 = vpop.f32.mrf.mxu0
        %v2190 = vadd.f32 %v2141, %v2189
        %v2191 = vpop.f32.mrf.mxu0
        %v2192 = vadd.f32 %v2143, %v2191
        %2193 = vmatmul.bf16.gmra.mxu0 %v1359
        %v2194 = vpop.f32.mrf.mxu0
        %v2195 = vadd.f32 %v2146, %v2194
        %v2196 = vpop.f32.mrf.mxu0
        %v2197 = vadd.f32 %v2148, %v2196
        %2198 = vmatmul.bf16.gmra.mxu0 %v1363
        %v2199 = vpop.f32.mrf.mxu0
        %v2200 = vadd.f32 %v2151, %v2199
        %v2201 = vpop.f32.mrf.mxu0
        %v2202 = vadd.f32 %v2153, %v2201
        %2203 = vmatmul.bf16.gmra.mxu0 %v1367
        %v2204 = vpop.f32.mrf.mxu0
        %v2205 = vadd.f32 %v2156, %v2204
        %v2206 = vpop.f32.mrf.mxu0
        %v2207 = vadd.f32 %v2158, %v2206
        %2208 = vdwg.mxu0
        %2209 = vmatpush.bf16.msra.mxu0 %v2029
        %2210 = vmatpush.bf16.msra.mxu0 %v2028
        %2211 = vmatpush.bf16.msra.mxu0 %v2027
        %2212 = vmatpush.bf16.msra.mxu0 %v2026
        %2213 = vmatpush.bf16.msra.mxu0 %v2025
        %2214 = vmatpush.bf16.msra.mxu0 %v2024
        %2215 = vmatpush.bf16.msra.mxu0 %v2023
        %2216 = vmatpush.bf16.msra.mxu0 %v2022
        %2217 = vmatmul.bf16.gmra.mxu0 %v1340
        %v2218 = vpop.f32.mrf.mxu0
        %v2219 = vadd.f32 %v2170, %v2218
        %v2220 = vpop.f32.mrf.mxu0
        %v2221 = vadd.f32 %v2172, %v2220
        %2222 = vmatmul.bf16.gmra.mxu0 %v1344
        %v2223 = vpop.f32.mrf.mxu0
        %v2224 = vadd.f32 %v2175, %v2223
        %v2225 = vpop.f32.mrf.mxu0
        %v2226 = vadd.f32 %v2177, %v2225
        %2227 = vmatmul.bf16.gmra.mxu0 %v1348
        %v2228 = vpop.f32.mrf.mxu0
        %v2229 = vadd.f32 %v2180, %v2228
        %v2230 = vpop.f32.mrf.mxu0
        %v2231 = vadd.f32 %v2182, %v2230
        %2232 = vmatmul.bf16.gmra.mxu0 %v1352
        %v2233 = vpop.f32.mrf.mxu0
        %v2234 = vadd.f32 %v2185, %v2233
        %v2235 = vpop.f32.mrf.mxu0
        %v2236 = vadd.f32 %v2187, %v2235
        %2237 = vmatmul.bf16.gmra.mxu0 %v1356
        %v2238 = vpop.f32.mrf.mxu0
        %v2239 = vadd.f32 %v2190, %v2238
        %v2240 = vpop.f32.mrf.mxu0
        %v2241 = vadd.f32 %v2192, %v2240
        %2242 = vmatmul.bf16.gmra.mxu0 %v1360
        %v2243 = vpop.f32.mrf.mxu0
        %v2244 = vadd.f32 %v2195, %v2243
        %v2245 = vpop.f32.mrf.mxu0
        %v2246 = vadd.f32 %v2197, %v2245
        %2247 = vmatmul.bf16.gmra.mxu0 %v1364
        %v2248 = vpop.f32.mrf.mxu0
        %v2249 = vadd.f32 %v2200, %v2248
        %v2250 = vpop.f32.mrf.mxu0
        %v2251 = vadd.f32 %v2202, %v2250
        %2252 = vmatmul.bf16.gmra.mxu0 %v1368
        %v2253 = vpop.f32.mrf.mxu0
        %v2254 = vadd.f32 %v2205, %v2253
        %v2255 = vpop.f32.mrf.mxu0
        %v2256 = vadd.f32 %v2207, %v2255
        %2257 = vdwg.mxu0
        %2258 = vst.msk [vmem:[%s332] sm:$0xff] %vm1789, %v2219
        %2259 = vst.msk [vmem:[%s332 + $0x8] sm:$0xff] %vm1789, %v2221
        %2260 = vst.msk [vmem:[%s332 + $0x10] sm:$0xff] %vm1789, %v2224
        %2261 = vst.msk [vmem:[%s332 + $0x18] sm:$0xff] %vm1789, %v2226
        %2262 = vst.msk [vmem:[%s332 + $0x20] sm:$0xff] %vm1789, %v2229
        %2263 = vst.msk [vmem:[%s332 + $0x28] sm:$0xff] %vm1789, %v2231
        %2264 = vst.msk [vmem:[%s332 + $0x30] sm:$0xff] %vm1789, %v2234
        %2265 = vst.msk [vmem:[%s332 + $0x38] sm:$0xff] %vm1789, %v2236
        %2266 = vst.msk [vmem:[%s332 + $0x40] sm:$0xff] %vm1789, %v2239
        %2267 = vst.msk [vmem:[%s332 + $0x48] sm:$0xff] %vm1789, %v2241
        %2268 = vst.msk [vmem:[%s332 + $0x50] sm:$0xff] %vm1789, %v2244
        %2269 = vst.msk [vmem:[%s332 + $0x58] sm:$0xff] %vm1789, %v2246
        %2270 = vst.msk [vmem:[%s332 + $0x60] sm:$0xff] %vm1789, %v2249
        %2271 = vst.msk [vmem:[%s332 + $0x68] sm:$0xff] %vm1789, %v2251
        %2272 = vst.msk [vmem:[%s332 + $0x70] sm:$0xff] %vm1789, %v2254
        %2273 = vst.msk [vmem:[%s332 + $0x78] sm:$0xff] %vm1789, %v2256
        %s2274 = sand.u32 %s162, 1
        %s2275 = scalar_lea.sflag [#allocation3], %s2274
        %s2276 = sand.u32 %s162, 1
        %s2277 = smul.addr %s2276, 256
        %s2278 = scalar_lea.vmem [#allocation2], %s2277
        %s2279 = smul.u32 16, %s23
        %p2280 = scmp.lt.s32.totalorder %s2279, 31
        %s2281 = scalar_select %p2280, %s2279, 31
        %s2282 = smul.addr %s2281, 8
        %s2283 = scalar_lea.vmem %s7, %s2282
        %s2284 = smul.u32 16, %s23
        %p2285 = scmp.lt.s32.totalorder %s2284, 31
        %s2286 = scalar_select %p2285, %s2284, 31
        %s2287 = smul.addr %s2286, 8
        %s2288 = scalar_lea.vmem %s8, %s2287
        // Predicated region
        $region45: #{tpu_custom_call.1} parent=43 // pred_check
          %p2289 = pneg %p172
        $region46: #{tpu_custom_call.1} parent=43 // pred_check_branch
          %2291 = sbr.rel (%p2289) target = $region48
        $region47: #{tpu_custom_call.1} parent=43 // pred_region
          %s2292 = smul.u32 16, %s23
          %2294 = vsyncadd %s2275, 0
          %s2295 = smul.addr %s2292, 4
          %s2296 = smul.addr %s2295, 4
          %s2297 = scalar_lea.hbm %s6, %s2296
          %s2298 = sshll.u32 %s2278, 4
          %s2299 = int_to_ptr.vmem [resolvable:$true] %s2298
          %s2300 = sshll.u32 %s2297, 4
          %s2301 = int_to_ptr.hbm [resolvable:$true] %s2300
          %2306 = dma.vmem_to_hbm [thread:$0]  %s2299, 4096, %s2301, %s2275, 256, 256, 16
        $region48: #{tpu_custom_call.1} parent=43 // pred_fallthru
          _
        // Predicated region
        $region49: #{tpu_custom_call.1} parent=43 // pred_check
          %p2307 = pneg %p198
        $region50: #{tpu_custom_call.1} parent=43 // pred_check_branch
          %2309 = sbr.rel (%p2307) target = $region52
        $region51: #{tpu_custom_call.1} parent=43 // pred_region
          %s2310 = smul.u32 16, %s23
        $region52: #{tpu_custom_call.1} parent=43 // pred_fallthru
          _
        // Predicated region
        $region53: #{tpu_custom_call.1} parent=43 // pred_check
          %p2311 = pneg %p224
        $region54: #{tpu_custom_call.1} parent=43 // pred_check_branch
          %2313 = sbr.rel (%p2311) target = $region56
        $region55: #{tpu_custom_call.1} parent=43 // pred_region
          %s2314 = smul.u32 16, %s23
        $region56: #{tpu_custom_call.1} parent=43 // pred_fallthru
          _
      $region44: #{tpu_custom_call.1} parent=5 // pred_fallthru
        _
      %p2315 = scmp.le.s32.totalorder 2, %s18
      // Predicated region
      $region57: #{tpu_custom_call.1} parent=5 // pred_check
        %p2316 = pneg %p2315
      $region58: #{tpu_custom_call.1} parent=5 // pred_check_branch
        %2318 = sbr.rel (%p2316) target = $region60
      $region59: #{tpu_custom_call.1} parent=5 // pred_region
        %s2319 = ssub.s32 %s18, 2
        // Predicated region
        $region61: #{tpu_custom_call.1} parent=59 // pred_check
          %p2320 = pneg %p178
        $region62: #{tpu_custom_call.1} parent=59 // pred_check_branch
          %2322 = sbr.rel (%p2320) target = $region64
        $region63: #{tpu_custom_call.1} parent=59 // pred_region
          %s2323 = sand.u32 %s163, 1
          %s2324 = scalar_lea.sflag [#allocation3], %s2323
          %s2325 = sand.u32 %s163, 1
          %s2326 = smul.addr %s2325, 256
          %s2327 = scalar_lea.vmem [#allocation2], %s2326
          %2329 = dma.done %s2324, 4096
        $region64: #{tpu_custom_call.1} parent=59 // pred_fallthru
          _
        // Predicated region
        $region65: #{tpu_custom_call.1} parent=59 // pred_check
          %p2330 = pneg %p204
        $region66: #{tpu_custom_call.1} parent=59 // pred_check_branch
          %2332 = sbr.rel (%p2330) target = $region68
        $region67: #{tpu_custom_call.1} parent=59 // pred_region
          %s2333 = smul.u32 16, %s24
          %p2334 = scmp.lt.s32.totalorder %s2333, 31
          %s2335 = scalar_select %p2334, %s2333, 31
          %s2336 = smul.addr %s2335, 8
          %s2337 = scalar_lea.vmem %s7, %s2336
        $region68: #{tpu_custom_call.1} parent=59 // pred_fallthru
          _
        // Predicated region
        $region69: #{tpu_custom_call.1} parent=59 // pred_check
          %p2338 = pneg %p230
        $region70: #{tpu_custom_call.1} parent=59 // pred_check_branch
          %2340 = sbr.rel (%p2338) target = $region72
        $region71: #{tpu_custom_call.1} parent=59 // pred_region
          %s2341 = smul.u32 16, %s24
          %p2342 = scmp.lt.s32.totalorder %s2341, 31
          %s2343 = scalar_select %p2342, %s2341, 31
          %s2344 = smul.addr %s2343, 8
          %s2345 = scalar_lea.vmem %s8, %s2344
        $region72: #{tpu_custom_call.1} parent=59 // pred_fallthru
          _
      $region60: #{tpu_custom_call.1} parent=5 // pred_fallthru
        _
    $region6: #{tpu_custom_call.1} parent=1 // loop_footer
      %s22 = sadd.s32 1, %s18
    $region7: #{tpu_custom_call.1} parent=1 // loop_footer_branch
      %17 = sbr.rel target = $region3
    $region8: #{tpu_custom_call.1} parent=1 // loop_exit
      _
    %2346 = vsyncpa [#allocation3], 1
    %s2347 = scalar_lea.sflag [#allocation3], 1
    %2348 = vsyncpa %s2347, 1

</llo_original>
